<compile_context>
chip_gen: v7x
topology: tpu7x:2x2x1
jax: 0.10.0
libtpu: 0.0.40
codegen_flags: <defaults>
</compile_context>

<pallas_src>
import functools

import jax
import jax.numpy as jnp
from jax.experimental import pallas as pl
from jax.experimental.pallas import tpu as pltpu


def _round_up(x, m):
    return ((x + m - 1) // m) * m


# ----------------------------------------------------------------------------
# Parallel dense kernel: row-tiled (M, K) @ (K, N) + bias.  Only used for the
# one-shot embedding-table projection (M = vocab size, tiny), but written to
# scale: adaptive row tile, minimal M padding, parallel row grid.
# ----------------------------------------------------------------------------
def _dense_kernel(x_ref, w_ref, b_ref, o_ref):
    o_ref[...] = (jnp.dot(x_ref[...], w_ref[...],
                          preferred_element_type=jnp.float32)
                  + b_ref[...]).astype(o_ref.dtype)


def _dense(x, w, b, *, tm_max=1024):
    """x: (M, K), w: (K, N), b: (1, N).  K, N multiples of 128."""
    M, K = x.shape
    N = w.shape[1]
    M8 = _round_up(M, 8)
    tm = min(tm_max, M8)                 # adaptive tile: no over-padding of M
    grid_m = pl.cdiv(M8, tm)
    M_pad = grid_m * tm
    if M_pad != M:
        x = jnp.pad(x, ((0, M_pad - M), (0, 0)))

    out = pl.pallas_call(
        _dense_kernel,
        out_shape=jax.ShapeDtypeStruct((M_pad, N), jnp.float32),
        grid_spec=pltpu.PrefetchScalarGridSpec(
            num_scalar_prefetch=0,
            grid=(grid_m,),
            in_specs=[
                pl.BlockSpec((tm, K), lambda i: (i, 0)),
                pl.BlockSpec((K, N), lambda i: (0, 0)),
                pl.BlockSpec((1, N), lambda i: (0, 0)),
            ],
            out_specs=pl.BlockSpec((tm, N), lambda i: (i, 0)),
        ),
        compiler_params=pltpu.CompilerParams(
            dimension_semantics=("parallel",)),
    )(x, w, b)
    return out[:M]


# ----------------------------------------------------------------------------
# Recurrence kernel with fused decoder epilogue.
# One grid step == one chunk of t_chunk timesteps; the time loop is fully
# unrolled inside the kernel; only h_prev @ W_hh^T + tanh is on the serial
# path.  After the loop, the whole chunk of hidden states is decoded with a
# single (t_chunk*B, H) @ (H, O) MXU matmul and written out; the final hidden
# state is carried in VMEM scratch and emitted as a small resident output.
# ----------------------------------------------------------------------------
def _rnn_chunk_kernel(xp_ref, h0_ref, whh_ref, wdec_ref, bdec_ref,
                      out_ref, hlast_ref, hs_scratch, h_carry,
                      *, t_chunk, t_total):
    # xp_ref  : (t_chunk, B, H)  gathered emb_proj rows (= x@W_ih^T + biases)
    # h0_ref  : (B, H)           initial hidden state
    # whh_ref : (H, H)           W_hh^T (resident across all chunks)
    # wdec_ref: (H, O)           W_dec^T (resident)
    # bdec_ref: (1, O)           decoder bias
    # out_ref : (t_chunk, B, O)  decoded logits for this chunk
    # hlast_ref: (B, H)          final hidden state (resident output)
    c = pl.program_id(0)

    @pl.when(c == 0)
    def _():
        h_carry[...] = h0_ref[...]
        hs_scratch[...] = jnp.zeros_like(hs_scratch)

    def do_step(t):
        h_new = jnp.tanh(
            xp_ref[t]
            + jnp.dot(h_carry[...], whh_ref[...],
                      preferred_element_type=jnp.float32))
        hs_scratch[t] = h_new
        h_carry[...] = h_new

    if t_total % t_chunk == 0:
        # Every chunk is full: fully unrolled serial loop, no per-step guard.
        for t in range(t_chunk):
            do_step(t)
    else:
        # Skip padded tail timesteps (pure latency otherwise); h_carry then
        # holds h_{T-1} exactly at the end of the last chunk.
        n_steps = jnp.minimum(t_chunk, t_total - c * t_chunk)
        for t in range(t_chunk):
            def _guarded(t=t):
                do_step(t)
            pl.when(t < n_steps)(_guarded)

    # Fused decoder epilogue: one big parallel MXU matmul over the chunk.
    hs = hs_scratch[...]
    tc, bp, hp = hs.shape
    logits = (jnp.dot(hs.reshape(tc * bp, hp), wdec_ref[...],
                      preferred_element_type=jnp.float32)
              + bdec_ref[...])
    out_ref[...] = logits.reshape(tc, bp, -1).astype(out_ref.dtype)
    hlast_ref[...] = h_carry[...]


# ----------------------------------------------------------------------------
# Wrapper: one-shot embedding projection + time-major gather + recurrence.
# ----------------------------------------------------------------------------
def rnn_forward(indices, h0, params):
    """indices: (B, T) int32, h0: (1, B, H) float32. Returns (output, (h_n,))."""
    emb = params["embedding"]                         # (V, H)
    B, T = indices.shape
    H = emb.shape[1]
    O = params["w_dec"].shape[0]

    # Lane/sublane-dense padded sizes.
    B_pad = _round_up(B, 8)
    H_pad = _round_up(H, 128)
    O_pad = _round_up(O, 128)
    t_chunk = min(_round_up(T, 8), 64)                # static-unroll friendly
    T_pad = _round_up(T, t_chunk)
    n_chunks = T_pad // t_chunk

    # Pre-transposed, zero-padded weights (zeros keep padded lanes exactly 0
    # through tanh, so padding never leaks into valid lanes).
    w_ih_t = jnp.pad(params["w_ih"].T, ((0, H_pad - H), (0, H_pad - H)))
    w_hh_t = jnp.pad(params["w_hh"].T, ((0, H_pad - H), (0, H_pad - H)))
    bias = jnp.pad((params["b_ih"] + params["b_hh"])[None, :],
                   ((0, 0), (0, H_pad - H)))          # fused b_ih + b_hh
    w_dec_t = jnp.pad(params["w_dec"].T, ((0, H_pad - H), (0, O_pad - O)))
    b_dec = jnp.pad(params["b_dec"][None, :], ((0, 0), (0, O_pad - O)))

    # Project the tiny embedding table ONCE (replaces a (T*B, H)x(H, H) dense).
    emb_p = jnp.pad(emb, ((0, 0), (0, H_pad - H)))    # (V, H_pad)
    emb_proj = _dense(emb_p, w_ih_t, bias)            # (V, H_pad)

    # Time-major gather of projected embeddings: single gather, no big
    # transpose pass over HBM.  (Data-dependent gather stays in JAX glue.)
    xp = jnp.take(emb_proj, indices.T, axis=0)        # (T, B, H_pad)
    xp = jnp.pad(xp, ((0, T_pad - T), (0, B_pad - B), (0, 0)))

    h0_p = jnp.pad(h0[0], ((0, B_pad - B), (0, H_pad - H)))   # (B_pad, H_pad)

    # Explicit VMEM budget (double-buffered xp/out blocks + resident weights +
    # scratch) so the pipeline keeps depth 2 even on v7x's 64 MiB VMEM.
    vmem_bytes = 4 * (
        3 * t_chunk * B_pad * H_pad       # xp input blocks
        + 3 * t_chunk * B_pad * O_pad     # out blocks
        + 2 * H_pad * H_pad               # W_hh^T
        + 2 * H_pad * O_pad               # W_dec^T
        + 2 * 8 * O_pad                   # b_dec
        + 4 * B_pad * H_pad               # h0 + h_last
        + (t_chunk + 1) * B_pad * H_pad   # hs + h_carry scratch
    )
    vmem_limit = min(max(2 * vmem_bytes, 16 << 20), 64 << 20)

    kernel = functools.partial(_rnn_chunk_kernel, t_chunk=t_chunk, t_total=T)

    out, h_last = pl.pallas_call(
        kernel,
        out_shape=(
            jax.ShapeDtypeStruct((T_pad, B_pad, O_pad), jnp.float32),
            jax.ShapeDtypeStruct((B_pad, H_pad), jnp.float32),
        ),
        grid_spec=pltpu.PrefetchScalarGridSpec(
            num_scalar_prefetch=0,
            grid=(n_chunks,),
            in_specs=[
                pl.BlockSpec((t_chunk, B_pad, H_pad), lambda c: (c, 0, 0)),
                pl.BlockSpec((B_pad, H_pad), lambda c: (0, 0)),
                pl.BlockSpec((H_pad, H_pad), lambda c: (0, 0)),
                pl.BlockSpec((H_pad, O_pad), lambda c: (0, 0)),
                pl.BlockSpec((1, O_pad), lambda c: (0, 0)),
            ],
            out_specs=(
                pl.BlockSpec((t_chunk, B_pad, O_pad), lambda c: (c, 0, 0)),
                pl.BlockSpec((B_pad, H_pad), lambda c: (0, 0)),
            ),
            scratch_shapes=[
                pltpu.VMEM((t_chunk, B_pad, H_pad), jnp.float32),  # hs chunk
                pltpu.VMEM((B_pad, H_pad), jnp.float32),           # h carry
            ],
        ),
        compiler_params=pltpu.CompilerParams(
            dimension_semantics=("arbitrary",),       # sequential recurrence
            vmem_limit_bytes=int(vmem_limit)),
    )(xp, h0_p, w_hh_t, w_dec_t, b_dec)

    output = jnp.transpose(out[:T, :B, :O], (1, 0, 2))            # (B, T, O)
    h_n = h_last[:B, :H][None]                                    # (1, B, H)
    return output, (h_n,)

    # TODO(synk): W_hh MXU weight-register residency (matmul_push_rhs per
    # chunk) left to a bundle-dump-driven follow-up; not expressible portably.


def rnn_forward_ref(indices, h0, params):
    """Pure-JAX reference (lax.scan) for correctness checking."""
    x = jnp.take(params["embedding"], indices, axis=0)   # (B, T, H)
    x = jnp.transpose(x, (1, 0, 2))                      # (T, B, H)

    def step(h, x_t):
        h_new = jnp.tanh(x_t @ params["w_ih"].T + params["b_ih"]
                         + h @ params["w_hh"].T + params["b_hh"])
        return h_new, h_new

    h_last, hs = jax.lax.scan(step, h0[0], x)            # hs: (T, B, H)
    out = hs @ params["w_dec"].T + params["b_dec"]       # (T, B, O)
    return jnp.transpose(out, (1, 0, 2)), (h_last[None],)


def init_params(key, input_size, hidden_size, output_size):
    ks = jax.random.split(key, 7)
    s = 1.0 / jnp.sqrt(hidden_size)
    return {
        "embedding": jax.random.normal(ks[0], (input_size, hidden_size), jnp.float32),
        "w_ih": jax.random.uniform(ks[1], (hidden_size, hidden_size), jnp.float32, -s, s),
        "w_hh": jax.random.uniform(ks[2], (hidden_size, hidden_size), jnp.float32, -s, s),
        "b_ih": jax.random.uniform(ks[3], (hidden_size,), jnp.float32, -s, s),
        "b_hh": jax.random.uniform(ks[4], (hidden_size,), jnp.float32, -s, s),
        "w_dec": jax.random.uniform(ks[5], (output_size, hidden_size), jnp.float32, -s, s),
        "b_dec": jax.random.uniform(ks[6], (output_size,), jnp.float32, -s, s),
    }


if __name__ == "__main__":
    INPUT_SIZE = 64     # vocabulary size
    HIDDEN = 32
    OUTPUT_SIZE = 64
    BATCH = 2
    SEQ = 8

    key = jax.random.PRNGKey(0)
    kp, ki, kh = jax.random.split(key, 3)
    params = init_params(kp, INPUT_SIZE, HIDDEN, OUTPUT_SIZE)

    indices = jax.random.randint(ki, (BATCH, SEQ), 0, INPUT_SIZE, dtype=jnp.int32)
    h0 = jax.random.uniform(kh, (1, BATCH, HIDDEN), jnp.float32)  # init_h_c()

    out, (h_n,) = jax.jit(rnn_forward)(indices, h0, params)
    jax.block_until_ready(out)
    jax.block_until_ready(h_n)

    out_ref, (h_n_ref,) = rnn_forward_ref(indices, h0, params)
    assert out.shape == (BATCH, SEQ, OUTPUT_SIZE)
    assert h_n.shape == (1, BATCH, HIDDEN)
    assert jnp.allclose(out, out_ref, atol=1e-5, rtol=1e-5)
    assert jnp.allclose(h_n, h_n_ref, atol=1e-5, rtol=1e-5)

    print("KERNEL_OK")
</pallas_src>

<mosaic_0001>
module attributes {stable_mosaic.version = 11 : i64} {
  func.func @_dense_kernel(%arg0: i32, %arg1: memref<64x128xf32, #tpu.memory_space<vmem>>, %arg2: memref<128x128xf32, #tpu.memory_space<vmem>>, %arg3: memref<1x128xf32, #tpu.memory_space<vmem>>, %arg4: memref<64x128xf32, #tpu.memory_space<vmem>>) attributes {dimension_semantics = [#tpu.dimension_semantics<parallel>], iteration_bounds = array<i64: 1>, scalar_prefetch = 0 : i64, scratch_operands = 0 : i64, tpu.core_type = #tpu.core_type<tc>, window_params = [{transform_indices = @transform_0, window_bounds = array<i64: 64, 128>}, {pipeline_mode = #tpu.pipeline_mode<synchronous>, transform_indices = @transform_1, window_bounds = array<i64: 128, 128>}, {pipeline_mode = #tpu.pipeline_mode<synchronous>, transform_indices = @transform_2, window_bounds = array<i64: 1, 128>}, {transform_indices = @transform_3, window_bounds = array<i64: 64, 128>}]} {
    %c0 = arith.constant 0 : index
    %c0_0 = arith.constant 0 : index
    %0 = vector.load %arg1[%c0, %c0_0] : memref<64x128xf32, #tpu.memory_space<vmem>>, vector<64x128xf32>
    %c0_1 = arith.constant 0 : index
    %c0_2 = arith.constant 0 : index
    %1 = vector.load %arg2[%c0_1, %c0_2] : memref<128x128xf32, #tpu.memory_space<vmem>>, vector<128x128xf32>
    %cst = arith.constant dense<0.000000e+00> : vector<64x128xf32>
    %2 = tpu.matmul %0, %1, %cst {dimension_numbers = #tpu.dot_dimension_numbers<[1], [0], [0], [1], [0, 0, 1, 1], [], []>} : vector<64x128xf32>, vector<128x128xf32>, vector<64x128xf32> -> vector<64x128xf32>
    %c0_3 = arith.constant 0 : index
    %c0_4 = arith.constant 0 : index
    %3 = vector.load %arg3[%c0_3, %c0_4] : memref<1x128xf32, #tpu.memory_space<vmem>>, vector<1x128xf32>
    %4 = vector.broadcast %3 : vector<1x128xf32> to vector<64x128xf32>
    %5 = arith.addf %2, %4 : vector<64x128xf32>
    %c0_5 = arith.constant 0 : index
    %c0_6 = arith.constant 0 : index
    %6 = vector.load %arg4[%c0_5, %c0_6] : memref<64x128xf32, #tpu.memory_space<vmem>>, vector<64x128xf32>
    tpu.vector_store %arg4[%c0_5, %c0_6], %5 {strides = array<i32>} : memref<64x128xf32, #tpu.memory_space<vmem>>, vector<64x128xf32>,
    return
  }
  func.func @transform_0(%arg0: i32) -> (i32, i32) {
    %c0_i32 = arith.constant 0 : i32
    %c0_i32_0 = arith.constant 0 : i32
    return %arg0, %c0_i32 : i32, i32
  }
  func.func @transform_1(%arg0: i32) -> (i32, i32) {
    %c0_i32 = arith.constant 0 : i32
    %c0_i32_0 = arith.constant 0 : i32
    %c0_i32_1 = arith.constant 0 : i32
    return %c0_i32, %c0_i32_0 : i32, i32
  }
  func.func @transform_2(%arg0: i32) -> (i32, i32) {
    %c0_i32 = arith.constant 0 : i32
    %c0_i32_0 = arith.constant 0 : i32
    %c0_i32_1 = arith.constant 0 : i32
    return %c0_i32, %c0_i32_0 : i32, i32
  }
  func.func @transform_3(%arg0: i32) -> (i32, i32) {
    %c0_i32 = arith.constant 0 : i32
    %c0_i32_0 = arith.constant 0 : i32
    return %arg0, %c0_i32 : i32, i32
  }
}

module attributes {stable_mosaic.version = 11 : i64} {
  func.func @_rnn_chunk_kernel(%arg0: i32, %arg1: memref<8x8x128xf32, #tpu.memory_space<vmem>>, %arg2: memref<8x128xf32, #tpu.memory_space<vmem>>, %arg3: memref<128x128xf32, #tpu.memory_space<vmem>>, %arg4: memref<128x128xf32, #tpu.memory_space<vmem>>, %arg5: memref<1x128xf32, #tpu.memory_space<vmem>>, %arg6: memref<8x8x128xf32, #tpu.memory_space<vmem>>, %arg7: memref<8x128xf32, #tpu.memory_space<vmem>>, %arg8: memref<8x8x128xf32, #tpu.memory_space<vmem>>, %arg9: memref<8x128xf32, #tpu.memory_space<vmem>>) attributes {dimension_semantics = [#tpu.dimension_semantics<arbitrary>], iteration_bounds = array<i64: 1>, scalar_prefetch = 0 : i64, scratch_operands = 2 : i64, tpu.core_type = #tpu.core_type<tc>, window_params = [{transform_indices = @transform_0, window_bounds = array<i64: 8, 8, 128>}, {pipeline_mode = #tpu.pipeline_mode<synchronous>, transform_indices = @transform_1, window_bounds = array<i64: 8, 128>}, {pipeline_mode = #tpu.pipeline_mode<synchronous>, transform_indices = @transform_2, window_bounds = array<i64: 128, 128>}, {pipeline_mode = #tpu.pipeline_mode<synchronous>, transform_indices = @transform_3, window_bounds = array<i64: 128, 128>}, {pipeline_mode = #tpu.pipeline_mode<synchronous>, transform_indices = @transform_4, window_bounds = array<i64: 1, 128>}, {transform_indices = @transform_5, window_bounds = array<i64: 8, 8, 128>}, {pipeline_mode = #tpu.pipeline_mode<synchronous>, transform_indices = @transform_6, window_bounds = array<i64: 8, 128>}]} {
    %c0_i32 = arith.constant 0 : i32
    %0 = arith.cmpi eq, %arg0, %c0_i32 : i32
    %1 = arith.extui %0 : i1 to i32
    %c0_i32_0 = arith.constant 0 : i32
    %2 = arith.cmpi ne, %1, %c0_i32_0 : i32
    scf.if %2 {
      %c0_111 = arith.constant 0 : index
      %c0_112 = arith.constant 0 : index
      %102 = vector.load %arg2[%c0_111, %c0_112] : memref<8x128xf32, #tpu.memory_space<vmem>>, vector<8x128xf32>
      %c0_113 = arith.constant 0 : index
      %c0_114 = arith.constant 0 : index
      %103 = vector.load %arg9[%c0_113, %c0_114] : memref<8x128xf32, #tpu.memory_space<vmem>>, vector<8x128xf32>
      tpu.vector_store %arg9[%c0_113, %c0_114], %102 {strides = array<i32>} : memref<8x128xf32, #tpu.memory_space<vmem>>, vector<8x128xf32>,
      %cst_115 = arith.constant 0.000000e+00 : f32
      %104 = vector.broadcast %cst_115 : f32 to vector<8x8x128xf32>
      %c0_116 = arith.constant 0 : index
      %c0_117 = arith.constant 0 : index
      %c0_118 = arith.constant 0 : index
      %105 = vector.load %arg8[%c0_116, %c0_117, %c0_118] : memref<8x8x128xf32, #tpu.memory_space<vmem>>, vector<8x8x128xf32>
      tpu.vector_store %arg8[%c0_116, %c0_117, %c0_118], %104 {strides = array<i32>} : memref<8x8x128xf32, #tpu.memory_space<vmem>>, vector<8x8x128xf32>,
    } else {
    }
    %c0 = arith.constant 0 : index
    %c0_1 = arith.constant 0 : index
    %c0_2 = arith.constant 0 : index
    %3 = vector.load %arg1[%c0, %c0_1, %c0_2] : memref<8x8x128xf32, #tpu.memory_space<vmem>>, vector<1x8x128xf32>
    %4 = vector.shape_cast %3 : vector<1x8x128xf32> to vector<8x128xf32>
    %c0_3 = arith.constant 0 : index
    %c0_4 = arith.constant 0 : index
    %5 = vector.load %arg9[%c0_3, %c0_4] : memref<8x128xf32, #tpu.memory_space<vmem>>, vector<8x128xf32>
    %c0_5 = arith.constant 0 : index
    %c0_6 = arith.constant 0 : index
    %6 = vector.load %arg3[%c0_5, %c0_6] : memref<128x128xf32, #tpu.memory_space<vmem>>, vector<128x128xf32>
    %cst = arith.constant dense<0.000000e+00> : vector<8x128xf32>
    %7 = tpu.matmul %5, %6, %cst {dimension_numbers = #tpu.dot_dimension_numbers<[1], [0], [0], [1], [0, 0, 1, 1], [], []>} : vector<8x128xf32>, vector<128x128xf32>, vector<8x128xf32> -> vector<8x128xf32>
    %8 = arith.addf %4, %7 : vector<8x128xf32>
    %9 = math.tanh %8 : vector<8x128xf32>
    %c0_7 = arith.constant 0 : index
    %c0_8 = arith.constant 0 : index
    %c0_9 = arith.constant 0 : index
    %10 = vector.load %arg8[%c0_7, %c0_8, %c0_9] : memref<8x8x128xf32, #tpu.memory_space<vmem>>, vector<1x8x128xf32>
    %11 = vector.shape_cast %10 : vector<1x8x128xf32> to vector<8x128xf32>
    %12 = vector.shape_cast %9 : vector<8x128xf32> to vector<1x8x128xf32>
    tpu.vector_store %arg8[%c0_7, %c0_8, %c0_9], %12 {strides = array<i32>} : memref<8x8x128xf32, #tpu.memory_space<vmem>>, vector<1x8x128xf32>,
    %c0_10 = arith.constant 0 : index
    %c0_11 = arith.constant 0 : index
    %13 = vector.load %arg9[%c0_10, %c0_11] : memref<8x128xf32, #tpu.memory_space<vmem>>, vector<8x128xf32>
    tpu.vector_store %arg9[%c0_10, %c0_11], %9 {strides = array<i32>} : memref<8x128xf32, #tpu.memory_space<vmem>>, vector<8x128xf32>,
    %c1 = arith.constant 1 : index
    %c0_12 = arith.constant 0 : index
    %c0_13 = arith.constant 0 : index
    %14 = vector.load %arg1[%c1, %c0_12, %c0_13] : memref<8x8x128xf32, #tpu.memory_space<vmem>>, vector<1x8x128xf32>
    %15 = vector.shape_cast %14 : vector<1x8x128xf32> to vector<8x128xf32>
    %c0_14 = arith.constant 0 : index
    %c0_15 = arith.constant 0 : index
    %16 = vector.load %arg9[%c0_14, %c0_15] : memref<8x128xf32, #tpu.memory_space<vmem>>, vector<8x128xf32>
    %c0_16 = arith.constant 0 : index
    %c0_17 = arith.constant 0 : index
    %17 = vector.load %arg3[%c0_16, %c0_17] : memref<128x128xf32, #tpu.memory_space<vmem>>, vector<128x128xf32>
    %cst_18 = arith.constant dense<0.000000e+00> : vector<8x128xf32>
    %18 = tpu.matmul %16, %17, %cst_18 {dimension_numbers = #tpu.dot_dimension_numbers<[1], [0], [0], [1], [0, 0, 1, 1], [], []>} : vector<8x128xf32>, vector<128x128xf32>, vector<8x128xf32> -> vector<8x128xf32>
    %19 = arith.addf %15, %18 : vector<8x128xf32>
    %20 = math.tanh %19 : vector<8x128xf32>
    %c1_19 = arith.constant 1 : index
    %c0_20 = arith.constant 0 : index
    %c0_21 = arith.constant 0 : index
    %21 = vector.load %arg8[%c1_19, %c0_20, %c0_21] : memref<8x8x128xf32, #tpu.memory_space<vmem>>, vector<1x8x128xf32>
    %22 = vector.shape_cast %21 : vector<1x8x128xf32> to vector<8x128xf32>
    %23 = vector.shape_cast %20 : vector<8x128xf32> to vector<1x8x128xf32>
    tpu.vector_store %arg8[%c1_19, %c0_20, %c0_21], %23 {strides = array<i32>} : memref<8x8x128xf32, #tpu.memory_space<vmem>>, vector<1x8x128xf32>,
    %c0_22 = arith.constant 0 : index
    %c0_23 = arith.constant 0 : index
    %24 = vector.load %arg9[%c0_22, %c0_23] : memref<8x128xf32, #tpu.memory_space<vmem>>, vector<8x128xf32>
    tpu.vector_store %arg9[%c0_22, %c0_23], %20 {strides = array<i32>} : memref<8x128xf32, #tpu.memory_space<vmem>>, vector<8x128xf32>,
    %c2 = arith.constant 2 : index
    %c0_24 = arith.constant 0 : index
    %c0_25 = arith.constant 0 : index
    %25 = vector.load %arg1[%c2, %c0_24, %c0_25] : memref<8x8x128xf32, #tpu.memory_space<vmem>>, vector<1x8x128xf32>
    %26 = vector.shape_cast %25 : vector<1x8x128xf32> to vector<8x128xf32>
    %c0_26 = arith.constant 0 : index
    %c0_27 = arith.constant 0 : index
    %27 = vector.load %arg9[%c0_26, %c0_27] : memref<8x128xf32, #tpu.memory_space<vmem>>, vector<8x128xf32>
    %c0_28 = arith.constant 0 : index
    %c0_29 = arith.constant 0 : index
    %28 = vector.load %arg3[%c0_28, %c0_29] : memref<128x128xf32, #tpu.memory_space<vmem>>, vector<128x128xf32>
    %cst_30 = arith.constant dense<0.000000e+00> : vector<8x128xf32>
    %29 = tpu.matmul %27, %28, %cst_30 {dimension_numbers = #tpu.dot_dimension_numbers<[1], [0], [0], [1], [0, 0, 1, 1], [], []>} : vector<8x128xf32>, vector<128x128xf32>, vector<8x128xf32> -> vector<8x128xf32>
    %30 = arith.addf %26, %29 : vector<8x128xf32>
    %31 = math.tanh %30 : vector<8x128xf32>
    %c2_31 = arith.constant 2 : index
    %c0_32 = arith.constant 0 : index
    %c0_33 = arith.constant 0 : index
    %32 = vector.load %arg8[%c2_31, %c0_32, %c0_33] : memref<8x8x128xf32, #tpu.memory_space<vmem>>, vector<1x8x128xf32>
    %33 = vector.shape_cast %32 : vector<1x8x128xf32> to vector<8x128xf32>
    %34 = vector.shape_cast %31 : vector<8x128xf32> to vector<1x8x128xf32>
    tpu.vector_store %arg8[%c2_31, %c0_32, %c0_33], %34 {strides = array<i32>} : memref<8x8x128xf32, #tpu.memory_space<vmem>>, vector<1x8x128xf32>,
    %c0_34 = arith.constant 0 : index
    %c0_35 = arith.constant 0 : index
    %35 = vector.load %arg9[%c0_34, %c0_35] : memref<8x128xf32, #tpu.memory_space<vmem>>, vector<8x128xf32>
    tpu.vector_store %arg9[%c0_34, %c0_35], %31 {strides = array<i32>} : memref<8x128xf32, #tpu.memory_space<vmem>>, vector<8x128xf32>,
    %c3 = arith.constant 3 : index
    %c0_36 = arith.constant 0 : index
    %c0_37 = arith.constant 0 : index
    %36 = vector.load %arg1[%c3, %c0_36, %c0_37] : memref<8x8x128xf32, #tpu.memory_space<vmem>>, vector<1x8x128xf32>
    %37 = vector.shape_cast %36 : vector<1x8x128xf32> to vector<8x128xf32>
    %c0_38 = arith.constant 0 : index
    %c0_39 = arith.constant 0 : index
    %38 = vector.load %arg9[%c0_38, %c0_39] : memref<8x128xf32, #tpu.memory_space<vmem>>, vector<8x128xf32>
    %c0_40 = arith.constant 0 : index
    %c0_41 = arith.constant 0 : index
    %39 = vector.load %arg3[%c0_40, %c0_41] : memref<128x128xf32, #tpu.memory_space<vmem>>, vector<128x128xf32>
    %cst_42 = arith.constant dense<0.000000e+00> : vector<8x128xf32>
    %40 = tpu.matmul %38, %39, %cst_42 {dimension_numbers = #tpu.dot_dimension_numbers<[1], [0], [0], [1], [0, 0, 1, 1], [], []>} : vector<8x128xf32>, vector<128x128xf32>, vector<8x128xf32> -> vector<8x128xf32>
    %41 = arith.addf %37, %40 : vector<8x128xf32>
    %42 = math.tanh %41 : vector<8x128xf32>
    %c3_43 = arith.constant 3 : index
    %c0_44 = arith.constant 0 : index
    %c0_45 = arith.constant 0 : index
    %43 = vector.load %arg8[%c3_43, %c0_44, %c0_45] : memref<8x8x128xf32, #tpu.memory_space<vmem>>, vector<1x8x128xf32>
    %44 = vector.shape_cast %43 : vector<1x8x128xf32> to vector<8x128xf32>
    %45 = vector.shape_cast %42 : vector<8x128xf32> to vector<1x8x128xf32>
    tpu.vector_store %arg8[%c3_43, %c0_44, %c0_45], %45 {strides = array<i32>} : memref<8x8x128xf32, #tpu.memory_space<vmem>>, vector<1x8x128xf32>,
    %c0_46 = arith.constant 0 : index
    %c0_47 = arith.constant 0 : index
    %46 = vector.load %arg9[%c0_46, %c0_47] : memref<8x128xf32, #tpu.memory_space<vmem>>, vector<8x128xf32>
    tpu.vector_store %arg9[%c0_46, %c0_47], %42 {strides = array<i32>} : memref<8x128xf32, #tpu.memory_space<vmem>>, vector<8x128xf32>,
    %c4 = arith.constant 4 : index
    %c0_48 = arith.constant 0 : index
    %c0_49 = arith.constant 0 : index
    %47 = vector.load %arg1[%c4, %c0_48, %c0_49] : memref<8x8x128xf32, #tpu.memory_space<vmem>>, vector<1x8x128xf32>
    %48 = vector.shape_cast %47 : vector<1x8x128xf32> to vector<8x128xf32>
    %c0_50 = arith.constant 0 : index
    %c0_51 = arith.constant 0 : index
    %49 = vector.load %arg9[%c0_50, %c0_51] : memref<8x128xf32, #tpu.memory_space<vmem>>, vector<8x128xf32>
    %c0_52 = arith.constant 0 : index
    %c0_53 = arith.constant 0 : index
    %50 = vector.load %arg3[%c0_52, %c0_53] : memref<128x128xf32, #tpu.memory_space<vmem>>, vector<128x128xf32>
    %cst_54 = arith.constant dense<0.000000e+00> : vector<8x128xf32>
    %51 = tpu.matmul %49, %50, %cst_54 {dimension_numbers = #tpu.dot_dimension_numbers<[1], [0], [0], [1], [0, 0, 1, 1], [], []>} : vector<8x128xf32>, vector<128x128xf32>, vector<8x128xf32> -> vector<8x128xf32>
    %52 = arith.addf %48, %51 : vector<8x128xf32>
    %53 = math.tanh %52 : vector<8x128xf32>
    %c4_55 = arith.constant 4 : index
    %c0_56 = arith.constant 0 : index
    %c0_57 = arith.constant 0 : index
    %54 = vector.load %arg8[%c4_55, %c0_56, %c0_57] : memref<8x8x128xf32, #tpu.memory_space<vmem>>, vector<1x8x128xf32>
    %55 = vector.shape_cast %54 : vector<1x8x128xf32> to vector<8x128xf32>
    %56 = vector.shape_cast %53 : vector<8x128xf32> to vector<1x8x128xf32>
    tpu.vector_store %arg8[%c4_55, %c0_56, %c0_57], %56 {strides = array<i32>} : memref<8x8x128xf32, #tpu.memory_space<vmem>>, vector<1x8x128xf32>,
    %c0_58 = arith.constant 0 : index
    %c0_59 = arith.constant 0 : index
    %57 = vector.load %arg9[%c0_58, %c0_59] : memref<8x128xf32, #tpu.memory_space<vmem>>, vector<8x128xf32>
    tpu.vector_store %arg9[%c0_58, %c0_59], %53 {strides = array<i32>} : memref<8x128xf32, #tpu.memory_space<vmem>>, vector<8x128xf32>,
    %c5 = arith.constant 5 : index
    %c0_60 = arith.constant 0 : index
    %c0_61 = arith.constant 0 : index
    %58 = vector.load %arg1[%c5, %c0_60, %c0_61] : memref<8x8x128xf32, #tpu.memory_space<vmem>>, vector<1x8x128xf32>
    %59 = vector.shape_cast %58 : vector<1x8x128xf32> to vector<8x128xf32>
    %c0_62 = arith.constant 0 : index
    %c0_63 = arith.constant 0 : index
    %60 = vector.load %arg9[%c0_62, %c0_63] : memref<8x128xf32, #tpu.memory_space<vmem>>, vector<8x128xf32>
    %c0_64 = arith.constant 0 : index
    %c0_65 = arith.constant 0 : index
    %61 = vector.load %arg3[%c0_64, %c0_65] : memref<128x128xf32, #tpu.memory_space<vmem>>, vector<128x128xf32>
    %cst_66 = arith.constant dense<0.000000e+00> : vector<8x128xf32>
    %62 = tpu.matmul %60, %61, %cst_66 {dimension_numbers = #tpu.dot_dimension_numbers<[1], [0], [0], [1], [0, 0, 1, 1], [], []>} : vector<8x128xf32>, vector<128x128xf32>, vector<8x128xf32> -> vector<8x128xf32>
    %63 = arith.addf %59, %62 : vector<8x128xf32>
    %64 = math.tanh %63 : vector<8x128xf32>
    %c5_67 = arith.constant 5 : index
    %c0_68 = arith.constant 0 : index
    %c0_69 = arith.constant 0 : index
    %65 = vector.load %arg8[%c5_67, %c0_68, %c0_69] : memref<8x8x128xf32, #tpu.memory_space<vmem>>, vector<1x8x128xf32>
    %66 = vector.shape_cast %65 : vector<1x8x128xf32> to vector<8x128xf32>
    %67 = vector.shape_cast %64 : vector<8x128xf32> to vector<1x8x128xf32>
    tpu.vector_store %arg8[%c5_67, %c0_68, %c0_69], %67 {strides = array<i32>} : memref<8x8x128xf32, #tpu.memory_space<vmem>>, vector<1x8x128xf32>,
    %c0_70 = arith.constant 0 : index
    %c0_71 = arith.constant 0 : index
    %68 = vector.load %arg9[%c0_70, %c0_71] : memref<8x128xf32, #tpu.memory_space<vmem>>, vector<8x128xf32>
    tpu.vector_store %arg9[%c0_70, %c0_71], %64 {strides = array<i32>} : memref<8x128xf32, #tpu.memory_space<vmem>>, vector<8x128xf32>,
    %c6 = arith.constant 6 : index
    %c0_72 = arith.constant 0 : index
    %c0_73 = arith.constant 0 : index
    %69 = vector.load %arg1[%c6, %c0_72, %c0_73] : memref<8x8x128xf32, #tpu.memory_space<vmem>>, vector<1x8x128xf32>
    %70 = vector.shape_cast %69 : vector<1x8x128xf32> to vector<8x128xf32>
    %c0_74 = arith.constant 0 : index
    %c0_75 = arith.constant 0 : index
    %71 = vector.load %arg9[%c0_74, %c0_75] : memref<8x128xf32, #tpu.memory_space<vmem>>, vector<8x128xf32>
    %c0_76 = arith.constant 0 : index
    %c0_77 = arith.constant 0 : index
    %72 = vector.load %arg3[%c0_76, %c0_77] : memref<128x128xf32, #tpu.memory_space<vmem>>, vector<128x128xf32>
    %cst_78 = arith.constant dense<0.000000e+00> : vector<8x128xf32>
    %73 = tpu.matmul %71, %72, %cst_78 {dimension_numbers = #tpu.dot_dimension_numbers<[1], [0], [0], [1], [0, 0, 1, 1], [], []>} : vector<8x128xf32>, vector<128x128xf32>, vector<8x128xf32> -> vector<8x128xf32>
    %74 = arith.addf %70, %73 : vector<8x128xf32>
    %75 = math.tanh %74 : vector<8x128xf32>
    %c6_79 = arith.constant 6 : index
    %c0_80 = arith.constant 0 : index
    %c0_81 = arith.constant 0 : index
    %76 = vector.load %arg8[%c6_79, %c0_80, %c0_81] : memref<8x8x128xf32, #tpu.memory_space<vmem>>, vector<1x8x128xf32>
    %77 = vector.shape_cast %76 : vector<1x8x128xf32> to vector<8x128xf32>
    %78 = vector.shape_cast %75 : vector<8x128xf32> to vector<1x8x128xf32>
    tpu.vector_store %arg8[%c6_79, %c0_80, %c0_81], %78 {strides = array<i32>} : memref<8x8x128xf32, #tpu.memory_space<vmem>>, vector<1x8x128xf32>,
    %c0_82 = arith.constant 0 : index
    %c0_83 = arith.constant 0 : index
    %79 = vector.load %arg9[%c0_82, %c0_83] : memref<8x128xf32, #tpu.memory_space<vmem>>, vector<8x128xf32>
    tpu.vector_store %arg9[%c0_82, %c0_83], %75 {strides = array<i32>} : memref<8x128xf32, #tpu.memory_space<vmem>>, vector<8x128xf32>,
    %c7 = arith.constant 7 : index
    %c0_84 = arith.constant 0 : index
    %c0_85 = arith.constant 0 : index
    %80 = vector.load %arg1[%c7, %c0_84, %c0_85] : memref<8x8x128xf32, #tpu.memory_space<vmem>>, vector<1x8x128xf32>
    %81 = vector.shape_cast %80 : vector<1x8x128xf32> to vector<8x128xf32>
    %c0_86 = arith.constant 0 : index
    %c0_87 = arith.constant 0 : index
    %82 = vector.load %arg9[%c0_86, %c0_87] : memref<8x128xf32, #tpu.memory_space<vmem>>, vector<8x128xf32>
    %c0_88 = arith.constant 0 : index
    %c0_89 = arith.constant 0 : index
    %83 = vector.load %arg3[%c0_88, %c0_89] : memref<128x128xf32, #tpu.memory_space<vmem>>, vector<128x128xf32>
    %cst_90 = arith.constant dense<0.000000e+00> : vector<8x128xf32>
    %84 = tpu.matmul %82, %83, %cst_90 {dimension_numbers = #tpu.dot_dimension_numbers<[1], [0], [0], [1], [0, 0, 1, 1], [], []>} : vector<8x128xf32>, vector<128x128xf32>, vector<8x128xf32> -> vector<8x128xf32>
    %85 = arith.addf %81, %84 : vector<8x128xf32>
    %86 = math.tanh %85 : vector<8x128xf32>
    %c7_91 = arith.constant 7 : index
    %c0_92 = arith.constant 0 : index
    %c0_93 = arith.constant 0 : index
    %87 = vector.load %arg8[%c7_91, %c0_92, %c0_93] : memref<8x8x128xf32, #tpu.memory_space<vmem>>, vector<1x8x128xf32>
    %88 = vector.shape_cast %87 : vector<1x8x128xf32> to vector<8x128xf32>
    %89 = vector.shape_cast %86 : vector<8x128xf32> to vector<1x8x128xf32>
    tpu.vector_store %arg8[%c7_91, %c0_92, %c0_93], %89 {strides = array<i32>} : memref<8x8x128xf32, #tpu.memory_space<vmem>>, vector<1x8x128xf32>,
    %c0_94 = arith.constant 0 : index
    %c0_95 = arith.constant 0 : index
    %90 = vector.load %arg9[%c0_94, %c0_95] : memref<8x128xf32, #tpu.memory_space<vmem>>, vector<8x128xf32>
    tpu.vector_store %arg9[%c0_94, %c0_95], %86 {strides = array<i32>} : memref<8x128xf32, #tpu.memory_space<vmem>>, vector<8x128xf32>,
    %c0_96 = arith.constant 0 : index
    %c0_97 = arith.constant 0 : index
    %c0_98 = arith.constant 0 : index
    %91 = vector.load %arg8[%c0_96, %c0_97, %c0_98] : memref<8x8x128xf32, #tpu.memory_space<vmem>>, vector<8x8x128xf32>
    %92 = vector.shape_cast %91 : vector<8x8x128xf32> to vector<64x128xf32>
    %c0_99 = arith.constant 0 : index
    %c0_100 = arith.constant 0 : index
    %93 = vector.load %arg4[%c0_99, %c0_100] : memref<128x128xf32, #tpu.memory_space<vmem>>, vector<128x128xf32>
    %cst_101 = arith.constant dense<0.000000e+00> : vector<64x128xf32>
    %94 = tpu.matmul %92, %93, %cst_101 {dimension_numbers = #tpu.dot_dimension_numbers<[1], [0], [0], [1], [0, 0, 1, 1], [], []>} : vector<64x128xf32>, vector<128x128xf32>, vector<64x128xf32> -> vector<64x128xf32>
    %c0_102 = arith.constant 0 : index
    %c0_103 = arith.constant 0 : index
    %95 = vector.load %arg5[%c0_102, %c0_103] : memref<1x128xf32, #tpu.memory_space<vmem>>, vector<1x128xf32>
    %96 = vector.broadcast %95 : vector<1x128xf32> to vector<64x128xf32>
    %97 = arith.addf %94, %96 : vector<64x128xf32>
    %98 = vector.shape_cast %97 : vector<64x128xf32> to vector<8x8x128xf32>
    %c0_104 = arith.constant 0 : index
    %c0_105 = arith.constant 0 : index
    %c0_106 = arith.constant 0 : index
    %99 = vector.load %arg6[%c0_104, %c0_105, %c0_106] : memref<8x8x128xf32, #tpu.memory_space<vmem>>, vector<8x8x128xf32>
    tpu.vector_store %arg6[%c0_104, %c0_105, %c0_106], %98 {strides = array<i32>} : memref<8x8x128xf32, #tpu.memory_space<vmem>>, vector<8x8x128xf32>,
    %c0_107 = arith.constant 0 : index
    %c0_108 = arith.constant 0 : index
    %100 = vector.load %arg9[%c0_107, %c0_108] : memref<8x128xf32, #tpu.memory_space<vmem>>, vector<8x128xf32>
    %c0_109 = arith.constant 0 : index
    %c0_110 = arith.constant 0 : index
    %101 = vector.load %arg7[%c0_109, %c0_110] : memref<8x128xf32, #tpu.memory_space<vmem>>, vector<8x128xf32>
    tpu.vector_store %arg7[%c0_109, %c0_110], %100 {strides = array<i32>} : memref<8x128xf32, #tpu.memory_space<vmem>>, vector<8x128xf32>,
    return
  }
  func.func @transform_0(%arg0: i32) -> (i32, i32, i32) {
    %c0_i32 = arith.constant 0 : i32
    %c0_i32_0 = arith.constant 0 : i32
    %c0_i32_1 = arith.constant 0 : i32
    return %arg0, %c0_i32, %c0_i32_0 : i32, i32, i32
  }
  func.func @transform_1(%arg0: i32) -> (i32, i32) {
    %c0_i32 = arith.constant 0 : i32
    %c0_i32_0 = arith.constant 0 : i32
    %c0_i32_1 = arith.constant 0 : i32
    return %c0_i32, %c0_i32_0 : i32, i32
  }
  func.func @transform_2(%arg0: i32) -> (i32, i32) {
    %c0_i32 = arith.constant 0 : i32
    %c0_i32_0 = arith.constant 0 : i32
    %c0_i32_1 = arith.constant 0 : i32
    return %c0_i32, %c0_i32_0 : i32, i32
  }
  func.func @transform_3(%arg0: i32) -> (i32, i32) {
    %c0_i32 = arith.constant 0 : i32
    %c0_i32_0 = arith.constant 0 : i32
    %c0_i32_1 = arith.constant 0 : i32
    return %c0_i32, %c0_i32_0 : i32, i32
  }
  func.func @transform_4(%arg0: i32) -> (i32, i32) {
    %c0_i32 = arith.constant 0 : i32
    %c0_i32_0 = arith.constant 0 : i32
    %c0_i32_1 = arith.constant 0 : i32
    return %c0_i32, %c0_i32_0 : i32, i32
  }
  func.func @transform_5(%arg0: i32) -> (i32, i32, i32) {
    %c0_i32 = arith.constant 0 : i32
    %c0_i32_0 = arith.constant 0 : i32
    %c0_i32_1 = arith.constant 0 : i32
    return %arg0, %c0_i32, %c0_i32_0 : i32, i32, i32
  }
  func.func @transform_6(%arg0: i32) -> (i32, i32) {
    %c0_i32 = arith.constant 0 : i32
    %c0_i32_0 = arith.constant 0 : i32
    %c0_i32_1 = arith.constant 0 : i32
    return %c0_i32, %c0_i32_0 : i32, i32
  }
}

</mosaic_0001>

<llo_original>
// kernel: rnn_forward.2
$region0: #{rnn_forward.2}
  #allocation0 [shape = 'u32[]', space=smem, size = 0x4, offset = 0x4, fixed_abs, tag = 'smem constant byte address 0x4 - core index']
  #allocation1 [shape = 'u32[144,128]{1,0:T(1,128)}', space=vmem, size = 0x12000, scoped, tag = 'internal scratch']
  %s0 = inlined_call_operand.vmem [shape: f32[64,128], index: 0, kind: input, shape index: {}]
  %s1 = inlined_call_operand.vmem [shape: f32[128,128], index: 1, kind: input, shape index: {}]
  %s2 = inlined_call_operand.vmem [shape: f32[1,128], index: 2, kind: input, shape index: {}]
  %s3 = inlined_call_operand.vmem [shape: f32[64,128], index: 3, kind: output, shape index: {}]
  %s4 = sld [smem:[#allocation0]]
  $region22: #{rnn_forward.2} parent=0
    _
  %s6 = ssub.s32 1, %s4
  %s7 = scalar_select 0, %s6, %s4
  // Predicated region
  $region2: #{rnn_forward.2} parent=0 // pred_check
    _
  $region3: #{rnn_forward.2} parent=0 // pred_check_branch
    %9 = sbr.rel (0) target = $region5
  $region4: #{rnn_forward.2} parent=0 // pred_region
    _
  $region5: #{rnn_forward.2} parent=0 // pred_fallthru
    _
  // Predicated region
  $region6: #{rnn_forward.2} parent=0 // pred_check
    _
  $region7: #{rnn_forward.2} parent=0 // pred_check_branch
    %11 = sbr.rel (0) target = $region9
  $region8: #{rnn_forward.2} parent=0 // pred_region
    _
  $region9: #{rnn_forward.2} parent=0 // pred_fallthru
    _
  // Predicated region
  $region10: #{rnn_forward.2} parent=0 // pred_check
    _
  $region11: #{rnn_forward.2} parent=0 // pred_check_branch
    %13 = sbr.rel (0) target = $region13
  $region12: #{rnn_forward.2} parent=0 // pred_region
    _
  $region13: #{rnn_forward.2} parent=0 // pred_fallthru
    _
  %v14 = vld [vmem:[%s0] sm:$0xff]
  %v15 = vld [vmem:[%s0 + $0x8] sm:$0xff]
  %v16 = vld [vmem:[%s0 + $0x10] sm:$0xff]
  %v17 = vld [vmem:[%s0 + $0x18] sm:$0xff]
  %v18 = vld [vmem:[%s0 + $0x20] sm:$0xff]
  %v19 = vld [vmem:[%s0 + $0x28] sm:$0xff]
  %v20 = vld [vmem:[%s0 + $0x30] sm:$0xff]
  %v21 = vld [vmem:[%s0 + $0x38] sm:$0xff]
  %v22 = vld [vmem:[%s1] sm:$0xff]
  %v23 = vld [vmem:[%s1 + $0x8] sm:$0xff]
  %v24 = vld [vmem:[%s1 + $0x10] sm:$0xff]
  %v25 = vld [vmem:[%s1 + $0x18] sm:$0xff]
  %v26 = vld [vmem:[%s1 + $0x20] sm:$0xff]
  %v27 = vld [vmem:[%s1 + $0x28] sm:$0xff]
  %v28 = vld [vmem:[%s1 + $0x30] sm:$0xff]
  %v29 = vld [vmem:[%s1 + $0x38] sm:$0xff]
  %v30 = vld [vmem:[%s1 + $0x40] sm:$0xff]
  %v31 = vld [vmem:[%s1 + $0x48] sm:$0xff]
  %v32 = vld [vmem:[%s1 + $0x50] sm:$0xff]
  %v33 = vld [vmem:[%s1 + $0x58] sm:$0xff]
  %v34 = vld [vmem:[%s1 + $0x60] sm:$0xff]
  %v35 = vld [vmem:[%s1 + $0x68] sm:$0xff]
  %v36 = vld [vmem:[%s1 + $0x70] sm:$0xff]
  %v37 = vld [vmem:[%s1 + $0x78] sm:$0xff]
  %v38 = vld [vmem:[%s2] sm:$0x1]
  %v40 = vlaneseq
  %v41 = vshrl.u32 %v40, 7
  %v42 = vsub.s32 0, %v41
  %v43 = vrot.slane %v38, %v42
  %45 = vmatprep.subr.mxu0 0.0
  %46 = vmatpush1.msra.mxu0 %v22
  %47 = vmatprep.subr.mxu0 0.0
  %48 = vmatpush1.msra.mxu0 %v23
  %49 = vmatprep.subr.mxu0 0.0
  %50 = vmatpush1.msra.mxu0 %v24
  %51 = vmatprep.subr.mxu0 0.0
  %52 = vmatpush1.msra.mxu0 %v25
  %53 = vmatprep.subr.mxu0 0.0
  %54 = vmatpush1.msra.mxu0 %v26
  %55 = vmatprep.subr.mxu0 0.0
  %56 = vmatpush1.msra.mxu0 %v27
  %57 = vmatprep.subr.mxu0 0.0
  %58 = vmatpush1.msra.mxu0 %v28
  %59 = vmatprep.subr.mxu0 0.0
  %60 = vmatpush1.msra.mxu0 %v29
  %61 = vmatprep.subr.mxu0 0.0
  %62 = vmatpush1.msra.mxu0 %v30
  %63 = vmatprep.subr.mxu0 0.0
  %64 = vmatpush1.msra.mxu0 %v31
  %65 = vmatprep.subr.mxu0 0.0
  %66 = vmatpush1.msra.mxu0 %v32
  %67 = vmatprep.subr.mxu0 0.0
  %68 = vmatpush1.msra.mxu0 %v33
  %69 = vmatprep.subr.mxu0 0.0
  %70 = vmatpush1.msra.mxu0 %v34
  %71 = vmatprep.subr.mxu0 0.0
  %72 = vmatpush1.msra.mxu0 %v35
  %73 = vmatprep.subr.mxu0 0.0
  %74 = vmatpush1.msra.mxu0 %v36
  %75 = vmatprep.subr.mxu0 0.0
  %76 = vmatpush1.msra.mxu0 %v37
  %77 = vmatprep.subr.mxu0 0.0
  %78 = vmatpush1.msra.mxu0 0.0
  %79 = vmatprep.subr.mxu0 0.0
  %80 = vmatpush1.msra.mxu0 0.0
  %81 = vmatprep.subr.mxu0 0.0
  %82 = vmatpush1.msra.mxu0 0.0
  %83 = vmatprep.subr.mxu0 0.0
  %84 = vmatpush1.msra.mxu0 0.0
  %85 = vmatprep.subr.mxu0 0.0
  %86 = vmatpush1.msra.mxu0 0.0
  %87 = vmatprep.subr.mxu0 0.0
  %88 = vmatpush1.msra.mxu0 0.0
  %89 = vmatprep.subr.mxu0 0.0
  %90 = vmatpush1.msra.mxu0 0.0
  %91 = vmatprep.subr.mxu0 0.0
  %92 = vmatpush1.msra.mxu0 0.0
  %93 = vmatprep.subr.mxu0 0.0
  %94 = vmatpush1.msra.mxu0 0.0
  %95 = vmatprep.subr.mxu0 0.0
  %96 = vmatpush1.msra.mxu0 0.0
  %97 = vmatprep.subr.mxu0 0.0
  %98 = vmatpush1.msra.mxu0 0.0
  %99 = vmatprep.subr.mxu0 0.0
  %100 = vmatpush1.msra.mxu0 0.0
  %101 = vmatprep.subr.mxu0 0.0
  %102 = vmatpush1.msra.mxu0 0.0
  %103 = vmatprep.subr.mxu0 0.0
  %104 = vmatpush1.msra.mxu0 0.0
  %105 = vmatprep.subr.mxu0 0.0
  %106 = vmatpush1.msra.mxu0 0.0
  %107 = vmatprep.subr.mxu0 0.0
  %108 = vmatpush1.msra.mxu0 0.0
  %109 = vmatprep.mubr.f32.mxu0 0.0
  %110 = vmatmul.mubr.f32.gmra.mrb[0].mxu0 %v14
  %v111 = vpop.f32.mrb[0].mxu0
  %v112 = vadd.f32 %v43, %v111
  %v113 = vpop.f32.mrb[0].mxu0
  %114 = vmatprep.mubr.f32.mxu0 0.0
  %115 = vmatmul.mubr.f32.gmra.mrb[0].mxu0 %v15
  %v116 = vpop.f32.mrb[0].mxu0
  %v117 = vadd.f32 %v43, %v116
  %v118 = vpop.f32.mrb[0].mxu0
  %119 = vmatprep.mubr.f32.mxu0 0.0
  %120 = vmatmul.mubr.f32.gmra.mrb[0].mxu0 %v16
  %v121 = vpop.f32.mrb[0].mxu0
  %v122 = vadd.f32 %v43, %v121
  %v123 = vpop.f32.mrb[0].mxu0
  %124 = vmatprep.mubr.f32.mxu0 0.0
  %125 = vmatmul.mubr.f32.gmra.mrb[0].mxu0 %v17
  %v126 = vpop.f32.mrb[0].mxu0
  %v127 = vadd.f32 %v43, %v126
  %v128 = vpop.f32.mrb[0].mxu0
  %129 = vmatprep.mubr.f32.mxu0 0.0
  %130 = vmatmul.mubr.f32.gmra.mrb[0].mxu0 %v18
  %v131 = vpop.f32.mrb[0].mxu0
  %v132 = vadd.f32 %v43, %v131
  %v133 = vpop.f32.mrb[0].mxu0
  %134 = vmatprep.mubr.f32.mxu0 0.0
  %135 = vmatmul.mubr.f32.gmra.mrb[0].mxu0 %v19
  %v136 = vpop.f32.mrb[0].mxu0
  %v137 = vadd.f32 %v43, %v136
  %v138 = vpop.f32.mrb[0].mxu0
  %139 = vmatprep.mubr.f32.mxu0 0.0
  %140 = vmatmul.mubr.f32.gmra.mrb[0].mxu0 %v20
  %v141 = vpop.f32.mrb[0].mxu0
  %v142 = vadd.f32 %v43, %v141
  %v143 = vpop.f32.mrb[0].mxu0
  %144 = vmatprep.mubr.f32.mxu0 0.0
  %145 = vmatmul.mubr.f32.gmra.mrb[0].mxu0 %v21
  %v146 = vpop.f32.mrb[0].mxu0
  %v147 = vadd.f32 %v43, %v146
  %v148 = vpop.f32.mrb[0].mxu0
  %149 = vdwg.mxu0
  %150 = vst [vmem:[%s3] sm:$0xff] %v112
  %151 = vst [vmem:[%s3 + $0x8] sm:$0xff] %v117
  %152 = vst [vmem:[%s3 + $0x10] sm:$0xff] %v122
  %153 = vst [vmem:[%s3 + $0x18] sm:$0xff] %v127
  %154 = vst [vmem:[%s3 + $0x20] sm:$0xff] %v132
  %155 = vst [vmem:[%s3 + $0x28] sm:$0xff] %v137
  %156 = vst [vmem:[%s3 + $0x30] sm:$0xff] %v142
  %157 = vst [vmem:[%s3 + $0x38] sm:$0xff] %v147
  // Predicated region
  $region14: #{rnn_forward.2} parent=0 // pred_check
    _
  $region15: #{rnn_forward.2} parent=0 // pred_check_branch
    %159 = sbr.rel (0) target = $region17
  $region16: #{rnn_forward.2} parent=0 // pred_region
    _
  $region17: #{rnn_forward.2} parent=0 // pred_fallthru
    _
  // Predicated region
  $region18: #{rnn_forward.2} parent=0 // pred_check
    _
  $region19: #{rnn_forward.2} parent=0 // pred_check_branch
    %161 = sbr.rel (0) target = $region21
  $region20: #{rnn_forward.2} parent=0 // pred_region
    _
  $region21: #{rnn_forward.2} parent=0 // pred_fallthru
    _

// kernel: rnn_forward.3
$region0: #{rnn_forward.3}
  #allocation0 [shape = 'u32[]', space=smem, size = 0x4, offset = 0x4, fixed_abs, tag = 'smem constant byte address 0x4 - core index']
  #allocation1 [shape = 'u32[144,128]{1,0:T(1,128)}', space=vmem, size = 0x12000, scoped, tag = 'internal scratch']
  #allocation2 [shape = 'f32[8,8,128]{2,1,0:T(8,128)}', space=vmem, size = 0x8000, scoped, tag = 'scratch operand']
  #allocation3 [shape = 'f32[8,128]{1,0:T(8,128)}', space=vmem, size = 0x1000, scoped, tag = 'scratch operand']
  %s0 = inlined_call_operand.vmem [shape: f32[8,8,128], index: 0, kind: input, shape index: {}]
  %s1 = inlined_call_operand.vmem [shape: f32[8,128], index: 1, kind: input, shape index: {}]
  %s2 = inlined_call_operand.vmem [shape: f32[128,128], index: 2, kind: input, shape index: {}]
  %s3 = inlined_call_operand.vmem [shape: f32[128,128], index: 3, kind: input, shape index: {}]
  %s4 = inlined_call_operand.vmem [shape: f32[1,128], index: 4, kind: input, shape index: {}]
  %s5 = inlined_call_operand.vmem [shape: f32[8,8,128], index: 5, kind: output, shape index: {0}]
  %s6 = inlined_call_operand.vmem [shape: f32[8,128], index: 6, kind: output, shape index: {1}]
  %7 = xla_tuple %s5, %s6
  %s8 = sld [smem:[#allocation0]]
  $region42: #{rnn_forward.3} parent=0
    _
  %s10 = ssub.s32 1, %s8
  %s11 = scalar_select 0, %s10, %s8
  // Predicated region
  $region2: #{rnn_forward.3} parent=0 // pred_check
    _
  $region3: #{rnn_forward.3} parent=0 // pred_check_branch
    %13 = sbr.rel (0) target = $region5
  $region4: #{rnn_forward.3} parent=0 // pred_region
    _
  $region5: #{rnn_forward.3} parent=0 // pred_fallthru
    _
  // Predicated region
  $region6: #{rnn_forward.3} parent=0 // pred_check
    _
  $region7: #{rnn_forward.3} parent=0 // pred_check_branch
    %15 = sbr.rel (0) target = $region9
  $region8: #{rnn_forward.3} parent=0 // pred_region
    _
  $region9: #{rnn_forward.3} parent=0 // pred_fallthru
    _
  // Predicated region
  $region10: #{rnn_forward.3} parent=0 // pred_check
    _
  $region11: #{rnn_forward.3} parent=0 // pred_check_branch
    %17 = sbr.rel (0) target = $region13
  $region12: #{rnn_forward.3} parent=0 // pred_region
    _
  $region13: #{rnn_forward.3} parent=0 // pred_fallthru
    _
  // Predicated region
  $region14: #{rnn_forward.3} parent=0 // pred_check
    _
  $region15: #{rnn_forward.3} parent=0 // pred_check_branch
    %19 = sbr.rel (0) target = $region17
  $region16: #{rnn_forward.3} parent=0 // pred_region
    _
  $region17: #{rnn_forward.3} parent=0 // pred_fallthru
    _
  // Predicated region
  $region18: #{rnn_forward.3} parent=0 // pred_check
    _
  $region19: #{rnn_forward.3} parent=0 // pred_check_branch
    %21 = sbr.rel (0) target = $region21
  $region20: #{rnn_forward.3} parent=0 // pred_region
    _
  $region21: #{rnn_forward.3} parent=0 // pred_fallthru
    _
  %p22 = scmp.eq.s32.totalorder 0, 0
  // Predicated region
  $region22: #{rnn_forward.3} parent=0 // pred_check
    %p23 = pneg %p22
  $region23: #{rnn_forward.3} parent=0 // pred_check_branch
    %25 = sbr.rel (%p23) target = $region25
  $region24: #{rnn_forward.3} parent=0 // pred_region
    %v26 = vld [vmem:[%s1] sm:$0xff]
    %27 = vst [vmem:[#allocation3] sm:$0xff] %v26
    %28 = vst [vmem:[#allocation2] sm:$0xff] 0.0
    %29 = vst [vmem:[#allocation2 + $0x8] sm:$0xff] 0.0
    %30 = vst [vmem:[#allocation2 + $0x10] sm:$0xff] 0.0
    %31 = vst [vmem:[#allocation2 + $0x18] sm:$0xff] 0.0
    %32 = vst [vmem:[#allocation2 + $0x20] sm:$0xff] 0.0
    %33 = vst [vmem:[#allocation2 + $0x28] sm:$0xff] 0.0
    %34 = vst [vmem:[#allocation2 + $0x30] sm:$0xff] 0.0
    %35 = vst [vmem:[#allocation2 + $0x38] sm:$0xff] 0.0
  $region25: #{rnn_forward.3} parent=0 // pred_fallthru
    _
  %v36 = vld [vmem:[%s0] sm:$0xff]
  %v37 = vld [vmem:[#allocation3] sm:$0xff]
  %v38 = vld [vmem:[%s2] sm:$0xff]
  %v39 = vld [vmem:[%s2 + $0x8] sm:$0xff]
  %v40 = vld [vmem:[%s2 + $0x10] sm:$0xff]
  %v41 = vld [vmem:[%s2 + $0x18] sm:$0xff]
  %v42 = vld [vmem:[%s2 + $0x20] sm:$0xff]
  %v43 = vld [vmem:[%s2 + $0x28] sm:$0xff]
  %v44 = vld [vmem:[%s2 + $0x30] sm:$0xff]
  %v45 = vld [vmem:[%s2 + $0x38] sm:$0xff]
  %v46 = vld [vmem:[%s2 + $0x40] sm:$0xff]
  %v47 = vld [vmem:[%s2 + $0x48] sm:$0xff]
  %v48 = vld [vmem:[%s2 + $0x50] sm:$0xff]
  %v49 = vld [vmem:[%s2 + $0x58] sm:$0xff]
  %v50 = vld [vmem:[%s2 + $0x60] sm:$0xff]
  %v51 = vld [vmem:[%s2 + $0x68] sm:$0xff]
  %v52 = vld [vmem:[%s2 + $0x70] sm:$0xff]
  %v53 = vld [vmem:[%s2 + $0x78] sm:$0xff]
  %54 = vmatprep.subr.mxu0 0.0
  %55 = vmatpush1.msra.mxu0 %v38
  %56 = vmatprep.subr.mxu0 0.0
  %57 = vmatpush1.msra.mxu0 %v39
  %58 = vmatprep.subr.mxu0 0.0
  %59 = vmatpush1.msra.mxu0 %v40
  %60 = vmatprep.subr.mxu0 0.0
  %61 = vmatpush1.msra.mxu0 %v41
  %62 = vmatprep.subr.mxu0 0.0
  %63 = vmatpush1.msra.mxu0 %v42
  %64 = vmatprep.subr.mxu0 0.0
  %65 = vmatpush1.msra.mxu0 %v43
  %66 = vmatprep.subr.mxu0 0.0
  %67 = vmatpush1.msra.mxu0 %v44
  %68 = vmatprep.subr.mxu0 0.0
  %69 = vmatpush1.msra.mxu0 %v45
  %70 = vmatprep.subr.mxu0 0.0
  %71 = vmatpush1.msra.mxu0 %v46
  %72 = vmatprep.subr.mxu0 0.0
  %73 = vmatpush1.msra.mxu0 %v47
  %74 = vmatprep.subr.mxu0 0.0
  %75 = vmatpush1.msra.mxu0 %v48
  %76 = vmatprep.subr.mxu0 0.0
  %77 = vmatpush1.msra.mxu0 %v49
  %78 = vmatprep.subr.mxu0 0.0
  %79 = vmatpush1.msra.mxu0 %v50
  %80 = vmatprep.subr.mxu0 0.0
  %81 = vmatpush1.msra.mxu0 %v51
  %82 = vmatprep.subr.mxu0 0.0
  %83 = vmatpush1.msra.mxu0 %v52
  %84 = vmatprep.subr.mxu0 0.0
  %85 = vmatpush1.msra.mxu0 %v53
  %86 = vmatprep.subr.mxu0 0.0
  %87 = vmatpush1.msra.mxu0 0.0
  %88 = vmatprep.subr.mxu0 0.0
  %89 = vmatpush1.msra.mxu0 0.0
  %90 = vmatprep.subr.mxu0 0.0
  %91 = vmatpush1.msra.mxu0 0.0
  %92 = vmatprep.subr.mxu0 0.0
  %93 = vmatpush1.msra.mxu0 0.0
  %94 = vmatprep.subr.mxu0 0.0
  %95 = vmatpush1.msra.mxu0 0.0
  %96 = vmatprep.subr.mxu0 0.0
  %97 = vmatpush1.msra.mxu0 0.0
  %98 = vmatprep.subr.mxu0 0.0
  %99 = vmatpush1.msra.mxu0 0.0
  %100 = vmatprep.subr.mxu0 0.0
  %101 = vmatpush1.msra.mxu0 0.0
  %102 = vmatprep.subr.mxu0 0.0
  %103 = vmatpush1.msra.mxu0 0.0
  %104 = vmatprep.subr.mxu0 0.0
  %105 = vmatpush1.msra.mxu0 0.0
  %106 = vmatprep.subr.mxu0 0.0
  %107 = vmatpush1.msra.mxu0 0.0
  %108 = vmatprep.subr.mxu0 0.0
  %109 = vmatpush1.msra.mxu0 0.0
  %110 = vmatprep.subr.mxu0 0.0
  %111 = vmatpush1.msra.mxu0 0.0
  %112 = vmatprep.subr.mxu0 0.0
  %113 = vmatpush1.msra.mxu0 0.0
  %114 = vmatprep.subr.mxu0 0.0
  %115 = vmatpush1.msra.mxu0 0.0
  %116 = vmatprep.subr.mxu0 0.0
  %117 = vmatpush1.msra.mxu0 0.0
  %118 = vmatprep.mubr.f32.mxu0 0.0
  %119 = vmatmul.mubr.f32.gmra.mrb[0].mxu0 %v37
  %v120 = vpop.f32.mrb[0].mxu0
  %v121 = vadd.f32 0.0, %v120
  %v122 = vpop.f32.mrb[0].mxu0
  %123 = vdwg.mxu0
  %v124 = vadd.f32 %v36, %v121
  %v125 = vtanh.pop %v124
  %126 = vst [vmem:[#allocation2] sm:$0xff] %v125
  %127 = vst [vmem:[#allocation3] sm:$0xff] %v125
  %s128 = scalar_lea.vmem %s0, 8
  %v129 = vld [vmem:[%s128] sm:$0xff]
  %v130 = vld [vmem:[#allocation3] sm:$0xff]
  %v131 = vld [vmem:[%s2] sm:$0xff]
  %v132 = vld [vmem:[%s2 + $0x8] sm:$0xff]
  %v133 = vld [vmem:[%s2 + $0x10] sm:$0xff]
  %v134 = vld [vmem:[%s2 + $0x18] sm:$0xff]
  %v135 = vld [vmem:[%s2 + $0x20] sm:$0xff]
  %v136 = vld [vmem:[%s2 + $0x28] sm:$0xff]
  %v137 = vld [vmem:[%s2 + $0x30] sm:$0xff]
  %v138 = vld [vmem:[%s2 + $0x38] sm:$0xff]
  %v139 = vld [vmem:[%s2 + $0x40] sm:$0xff]
  %v140 = vld [vmem:[%s2 + $0x48] sm:$0xff]
  %v141 = vld [vmem:[%s2 + $0x50] sm:$0xff]
  %v142 = vld [vmem:[%s2 + $0x58] sm:$0xff]
  %v143 = vld [vmem:[%s2 + $0x60] sm:$0xff]
  %v144 = vld [vmem:[%s2 + $0x68] sm:$0xff]
  %v145 = vld [vmem:[%s2 + $0x70] sm:$0xff]
  %v146 = vld [vmem:[%s2 + $0x78] sm:$0xff]
  %147 = vmatprep.subr.mxu0 0.0
  %148 = vmatpush1.msra.mxu0 %v131
  %149 = vmatprep.subr.mxu0 0.0
  %150 = vmatpush1.msra.mxu0 %v132
  %151 = vmatprep.subr.mxu0 0.0
  %152 = vmatpush1.msra.mxu0 %v133
  %153 = vmatprep.subr.mxu0 0.0
  %154 = vmatpush1.msra.mxu0 %v134
  %155 = vmatprep.subr.mxu0 0.0
  %156 = vmatpush1.msra.mxu0 %v135
  %157 = vmatprep.subr.mxu0 0.0
  %158 = vmatpush1.msra.mxu0 %v136
  %159 = vmatprep.subr.mxu0 0.0
  %160 = vmatpush1.msra.mxu0 %v137
  %161 = vmatprep.subr.mxu0 0.0
  %162 = vmatpush1.msra.mxu0 %v138
  %163 = vmatprep.subr.mxu0 0.0
  %164 = vmatpush1.msra.mxu0 %v139
  %165 = vmatprep.subr.mxu0 0.0
  %166 = vmatpush1.msra.mxu0 %v140
  %167 = vmatprep.subr.mxu0 0.0
  %168 = vmatpush1.msra.mxu0 %v141
  %169 = vmatprep.subr.mxu0 0.0
  %170 = vmatpush1.msra.mxu0 %v142
  %171 = vmatprep.subr.mxu0 0.0
  %172 = vmatpush1.msra.mxu0 %v143
  %173 = vmatprep.subr.mxu0 0.0
  %174 = vmatpush1.msra.mxu0 %v144
  %175 = vmatprep.subr.mxu0 0.0
  %176 = vmatpush1.msra.mxu0 %v145
  %177 = vmatprep.subr.mxu0 0.0
  %178 = vmatpush1.msra.mxu0 %v146
  %179 = vmatprep.subr.mxu0 0.0
  %180 = vmatpush1.msra.mxu0 0.0
  %181 = vmatprep.subr.mxu0 0.0
  %182 = vmatpush1.msra.mxu0 0.0
  %183 = vmatprep.subr.mxu0 0.0
  %184 = vmatpush1.msra.mxu0 0.0
  %185 = vmatprep.subr.mxu0 0.0
  %186 = vmatpush1.msra.mxu0 0.0
  %187 = vmatprep.subr.mxu0 0.0
  %188 = vmatpush1.msra.mxu0 0.0
  %189 = vmatprep.subr.mxu0 0.0
  %190 = vmatpush1.msra.mxu0 0.0
  %191 = vmatprep.subr.mxu0 0.0
  %192 = vmatpush1.msra.mxu0 0.0
  %193 = vmatprep.subr.mxu0 0.0
  %194 = vmatpush1.msra.mxu0 0.0
  %195 = vmatprep.subr.mxu0 0.0
  %196 = vmatpush1.msra.mxu0 0.0
  %197 = vmatprep.subr.mxu0 0.0
  %198 = vmatpush1.msra.mxu0 0.0
  %199 = vmatprep.subr.mxu0 0.0
  %200 = vmatpush1.msra.mxu0 0.0
  %201 = vmatprep.subr.mxu0 0.0
  %202 = vmatpush1.msra.mxu0 0.0
  %203 = vmatprep.subr.mxu0 0.0
  %204 = vmatpush1.msra.mxu0 0.0
  %205 = vmatprep.subr.mxu0 0.0
  %206 = vmatpush1.msra.mxu0 0.0
  %207 = vmatprep.subr.mxu0 0.0
  %208 = vmatpush1.msra.mxu0 0.0
  %209 = vmatprep.subr.mxu0 0.0
  %210 = vmatpush1.msra.mxu0 0.0
  %211 = vmatprep.mubr.f32.mxu0 0.0
  %212 = vmatmul.mubr.f32.gmra.mrb[0].mxu0 %v130
  %v213 = vpop.f32.mrb[0].mxu0
  %v214 = vadd.f32 0.0, %v213
  %v215 = vpop.f32.mrb[0].mxu0
  %216 = vdwg.mxu0
  %v217 = vadd.f32 %v129, %v214
  %v218 = vtanh.pop %v217
  %s219 = scalar_lea.vmem [#allocation2], 8
  %220 = vst [vmem:[%s219] sm:$0xff] %v218
  %221 = vst [vmem:[#allocation3] sm:$0xff] %v218
  %s222 = scalar_lea.vmem %s0, 16
  %v223 = vld [vmem:[%s222] sm:$0xff]
  %v224 = vld [vmem:[#allocation3] sm:$0xff]
  %v225 = vld [vmem:[%s2] sm:$0xff]
  %v226 = vld [vmem:[%s2 + $0x8] sm:$0xff]
  %v227 = vld [vmem:[%s2 + $0x10] sm:$0xff]
  %v228 = vld [vmem:[%s2 + $0x18] sm:$0xff]
  %v229 = vld [vmem:[%s2 + $0x20] sm:$0xff]
  %v230 = vld [vmem:[%s2 + $0x28] sm:$0xff]
  %v231 = vld [vmem:[%s2 + $0x30] sm:$0xff]
  %v232 = vld [vmem:[%s2 + $0x38] sm:$0xff]
  %v233 = vld [vmem:[%s2 + $0x40] sm:$0xff]
  %v234 = vld [vmem:[%s2 + $0x48] sm:$0xff]
  %v235 = vld [vmem:[%s2 + $0x50] sm:$0xff]
  %v236 = vld [vmem:[%s2 + $0x58] sm:$0xff]
  %v237 = vld [vmem:[%s2 + $0x60] sm:$0xff]
  %v238 = vld [vmem:[%s2 + $0x68] sm:$0xff]
  %v239 = vld [vmem:[%s2 + $0x70] sm:$0xff]
  %v240 = vld [vmem:[%s2 + $0x78] sm:$0xff]
  %241 = vmatprep.subr.mxu0 0.0
  %242 = vmatpush1.msra.mxu0 %v225
  %243 = vmatprep.subr.mxu0 0.0
  %244 = vmatpush1.msra.mxu0 %v226
  %245 = vmatprep.subr.mxu0 0.0
  %246 = vmatpush1.msra.mxu0 %v227
  %247 = vmatprep.subr.mxu0 0.0
  %248 = vmatpush1.msra.mxu0 %v228
  %249 = vmatprep.subr.mxu0 0.0
  %250 = vmatpush1.msra.mxu0 %v229
  %251 = vmatprep.subr.mxu0 0.0
  %252 = vmatpush1.msra.mxu0 %v230
  %253 = vmatprep.subr.mxu0 0.0
  %254 = vmatpush1.msra.mxu0 %v231
  %255 = vmatprep.subr.mxu0 0.0
  %256 = vmatpush1.msra.mxu0 %v232
  %257 = vmatprep.subr.mxu0 0.0
  %258 = vmatpush1.msra.mxu0 %v233
  %259 = vmatprep.subr.mxu0 0.0
  %260 = vmatpush1.msra.mxu0 %v234
  %261 = vmatprep.subr.mxu0 0.0
  %262 = vmatpush1.msra.mxu0 %v235
  %263 = vmatprep.subr.mxu0 0.0
  %264 = vmatpush1.msra.mxu0 %v236
  %265 = vmatprep.subr.mxu0 0.0
  %266 = vmatpush1.msra.mxu0 %v237
  %267 = vmatprep.subr.mxu0 0.0
  %268 = vmatpush1.msra.mxu0 %v238
  %269 = vmatprep.subr.mxu0 0.0
  %270 = vmatpush1.msra.mxu0 %v239
  %271 = vmatprep.subr.mxu0 0.0
  %272 = vmatpush1.msra.mxu0 %v240
  %273 = vmatprep.subr.mxu0 0.0
  %274 = vmatpush1.msra.mxu0 0.0
  %275 = vmatprep.subr.mxu0 0.0
  %276 = vmatpush1.msra.mxu0 0.0
  %277 = vmatprep.subr.mxu0 0.0
  %278 = vmatpush1.msra.mxu0 0.0
  %279 = vmatprep.subr.mxu0 0.0
  %280 = vmatpush1.msra.mxu0 0.0
  %281 = vmatprep.subr.mxu0 0.0
  %282 = vmatpush1.msra.mxu0 0.0
  %283 = vmatprep.subr.mxu0 0.0
  %284 = vmatpush1.msra.mxu0 0.0
  %285 = vmatprep.subr.mxu0 0.0
  %286 = vmatpush1.msra.mxu0 0.0
  %287 = vmatprep.subr.mxu0 0.0
  %288 = vmatpush1.msra.mxu0 0.0
  %289 = vmatprep.subr.mxu0 0.0
  %290 = vmatpush1.msra.mxu0 0.0
  %291 = vmatprep.subr.mxu0 0.0
  %292 = vmatpush1.msra.mxu0 0.0
  %293 = vmatprep.subr.mxu0 0.0
  %294 = vmatpush1.msra.mxu0 0.0
  %295 = vmatprep.subr.mxu0 0.0
  %296 = vmatpush1.msra.mxu0 0.0
  %297 = vmatprep.subr.mxu0 0.0
  %298 = vmatpush1.msra.mxu0 0.0
  %299 = vmatprep.subr.mxu0 0.0
  %300 = vmatpush1.msra.mxu0 0.0
  %301 = vmatprep.subr.mxu0 0.0
  %302 = vmatpush1.msra.mxu0 0.0
  %303 = vmatprep.subr.mxu0 0.0
  %304 = vmatpush1.msra.mxu0 0.0
  %305 = vmatprep.mubr.f32.mxu0 0.0
  %306 = vmatmul.mubr.f32.gmra.mrb[0].mxu0 %v224
  %v307 = vpop.f32.mrb[0].mxu0
  %v308 = vadd.f32 0.0, %v307
  %v309 = vpop.f32.mrb[0].mxu0
  %310 = vdwg.mxu0
  %v311 = vadd.f32 %v223, %v308
  %v312 = vtanh.pop %v311
  %s313 = scalar_lea.vmem [#allocation2], 16
  %314 = vst [vmem:[%s313] sm:$0xff] %v312
  %315 = vst [vmem:[#allocation3] sm:$0xff] %v312
  %s316 = scalar_lea.vmem %s0, 24
  %v317 = vld [vmem:[%s316] sm:$0xff]
  %v318 = vld [vmem:[#allocation3] sm:$0xff]
  %v319 = vld [vmem:[%s2] sm:$0xff]
  %v320 = vld [vmem:[%s2 + $0x8] sm:$0xff]
  %v321 = vld [vmem:[%s2 + $0x10] sm:$0xff]
  %v322 = vld [vmem:[%s2 + $0x18] sm:$0xff]
  %v323 = vld [vmem:[%s2 + $0x20] sm:$0xff]
  %v324 = vld [vmem:[%s2 + $0x28] sm:$0xff]
  %v325 = vld [vmem:[%s2 + $0x30] sm:$0xff]
  %v326 = vld [vmem:[%s2 + $0x38] sm:$0xff]
  %v327 = vld [vmem:[%s2 + $0x40] sm:$0xff]
  %v328 = vld [vmem:[%s2 + $0x48] sm:$0xff]
  %v329 = vld [vmem:[%s2 + $0x50] sm:$0xff]
  %v330 = vld [vmem:[%s2 + $0x58] sm:$0xff]
  %v331 = vld [vmem:[%s2 + $0x60] sm:$0xff]
  %v332 = vld [vmem:[%s2 + $0x68] sm:$0xff]
  %v333 = vld [vmem:[%s2 + $0x70] sm:$0xff]
  %v334 = vld [vmem:[%s2 + $0x78] sm:$0xff]
  %335 = vmatprep.subr.mxu0 0.0
  %336 = vmatpush1.msra.mxu0 %v319
  %337 = vmatprep.subr.mxu0 0.0
  %338 = vmatpush1.msra.mxu0 %v320
  %339 = vmatprep.subr.mxu0 0.0
  %340 = vmatpush1.msra.mxu0 %v321
  %341 = vmatprep.subr.mxu0 0.0
  %342 = vmatpush1.msra.mxu0 %v322
  %343 = vmatprep.subr.mxu0 0.0
  %344 = vmatpush1.msra.mxu0 %v323
  %345 = vmatprep.subr.mxu0 0.0
  %346 = vmatpush1.msra.mxu0 %v324
  %347 = vmatprep.subr.mxu0 0.0
  %348 = vmatpush1.msra.mxu0 %v325
  %349 = vmatprep.subr.mxu0 0.0
  %350 = vmatpush1.msra.mxu0 %v326
  %351 = vmatprep.subr.mxu0 0.0
  %352 = vmatpush1.msra.mxu0 %v327
  %353 = vmatprep.subr.mxu0 0.0
  %354 = vmatpush1.msra.mxu0 %v328
  %355 = vmatprep.subr.mxu0 0.0
  %356 = vmatpush1.msra.mxu0 %v329
  %357 = vmatprep.subr.mxu0 0.0
  %358 = vmatpush1.msra.mxu0 %v330
  %359 = vmatprep.subr.mxu0 0.0
  %360 = vmatpush1.msra.mxu0 %v331
  %361 = vmatprep.subr.mxu0 0.0
  %362 = vmatpush1.msra.mxu0 %v332
  %363 = vmatprep.subr.mxu0 0.0
  %364 = vmatpush1.msra.mxu0 %v333
  %365 = vmatprep.subr.mxu0 0.0
  %366 = vmatpush1.msra.mxu0 %v334
  %367 = vmatprep.subr.mxu0 0.0
  %368 = vmatpush1.msra.mxu0 0.0
  %369 = vmatprep.subr.mxu0 0.0
  %370 = vmatpush1.msra.mxu0 0.0
  %371 = vmatprep.subr.mxu0 0.0
  %372 = vmatpush1.msra.mxu0 0.0
  %373 = vmatprep.subr.mxu0 0.0
  %374 = vmatpush1.msra.mxu0 0.0
  %375 = vmatprep.subr.mxu0 0.0
  %376 = vmatpush1.msra.mxu0 0.0
  %377 = vmatprep.subr.mxu0 0.0
  %378 = vmatpush1.msra.mxu0 0.0
  %379 = vmatprep.subr.mxu0 0.0
  %380 = vmatpush1.msra.mxu0 0.0
  %381 = vmatprep.subr.mxu0 0.0
  %382 = vmatpush1.msra.mxu0 0.0
  %383 = vmatprep.subr.mxu0 0.0
  %384 = vmatpush1.msra.mxu0 0.0
  %385 = vmatprep.subr.mxu0 0.0
  %386 = vmatpush1.msra.mxu0 0.0
  %387 = vmatprep.subr.mxu0 0.0
  %388 = vmatpush1.msra.mxu0 0.0
  %389 = vmatprep.subr.mxu0 0.0
  %390 = vmatpush1.msra.mxu0 0.0
  %391 = vmatprep.subr.mxu0 0.0
  %392 = vmatpush1.msra.mxu0 0.0
  %393 = vmatprep.subr.mxu0 0.0
  %394 = vmatpush1.msra.mxu0 0.0
  %395 = vmatprep.subr.mxu0 0.0
  %396 = vmatpush1.msra.mxu0 0.0
  %397 = vmatprep.subr.mxu0 0.0
  %398 = vmatpush1.msra.mxu0 0.0
  %399 = vmatprep.mubr.f32.mxu0 0.0
  %400 = vmatmul.mubr.f32.gmra.mrb[0].mxu0 %v318
  %v401 = vpop.f32.mrb[0].mxu0
  %v402 = vadd.f32 0.0, %v401
  %v403 = vpop.f32.mrb[0].mxu0
  %404 = vdwg.mxu0
  %v405 = vadd.f32 %v317, %v402
  %v406 = vtanh.pop %v405
  %s407 = scalar_lea.vmem [#allocation2], 24
  %408 = vst [vmem:[%s407] sm:$0xff] %v406
  %409 = vst [vmem:[#allocation3] sm:$0xff] %v406
  %s410 = scalar_lea.vmem %s0, 32
  %v411 = vld [vmem:[%s410] sm:$0xff]
  %v412 = vld [vmem:[#allocation3] sm:$0xff]
  %v413 = vld [vmem:[%s2] sm:$0xff]
  %v414 = vld [vmem:[%s2 + $0x8] sm:$0xff]
  %v415 = vld [vmem:[%s2 + $0x10] sm:$0xff]
  %v416 = vld [vmem:[%s2 + $0x18] sm:$0xff]
  %v417 = vld [vmem:[%s2 + $0x20] sm:$0xff]
  %v418 = vld [vmem:[%s2 + $0x28] sm:$0xff]
  %v419 = vld [vmem:[%s2 + $0x30] sm:$0xff]
  %v420 = vld [vmem:[%s2 + $0x38] sm:$0xff]
  %v421 = vld [vmem:[%s2 + $0x40] sm:$0xff]
  %v422 = vld [vmem:[%s2 + $0x48] sm:$0xff]
  %v423 = vld [vmem:[%s2 + $0x50] sm:$0xff]
  %v424 = vld [vmem:[%s2 + $0x58] sm:$0xff]
  %v425 = vld [vmem:[%s2 + $0x60] sm:$0xff]
  %v426 = vld [vmem:[%s2 + $0x68] sm:$0xff]
  %v427 = vld [vmem:[%s2 + $0x70] sm:$0xff]
  %v428 = vld [vmem:[%s2 + $0x78] sm:$0xff]
  %429 = vmatprep.subr.mxu0 0.0
  %430 = vmatpush1.msra.mxu0 %v413
  %431 = vmatprep.subr.mxu0 0.0
  %432 = vmatpush1.msra.mxu0 %v414
  %433 = vmatprep.subr.mxu0 0.0
  %434 = vmatpush1.msra.mxu0 %v415
  %435 = vmatprep.subr.mxu0 0.0
  %436 = vmatpush1.msra.mxu0 %v416
  %437 = vmatprep.subr.mxu0 0.0
  %438 = vmatpush1.msra.mxu0 %v417
  %439 = vmatprep.subr.mxu0 0.0
  %440 = vmatpush1.msra.mxu0 %v418
  %441 = vmatprep.subr.mxu0 0.0
  %442 = vmatpush1.msra.mxu0 %v419
  %443 = vmatprep.subr.mxu0 0.0
  %444 = vmatpush1.msra.mxu0 %v420
  %445 = vmatprep.subr.mxu0 0.0
  %446 = vmatpush1.msra.mxu0 %v421
  %447 = vmatprep.subr.mxu0 0.0
  %448 = vmatpush1.msra.mxu0 %v422
  %449 = vmatprep.subr.mxu0 0.0
  %450 = vmatpush1.msra.mxu0 %v423
  %451 = vmatprep.subr.mxu0 0.0
  %452 = vmatpush1.msra.mxu0 %v424
  %453 = vmatprep.subr.mxu0 0.0
  %454 = vmatpush1.msra.mxu0 %v425
  %455 = vmatprep.subr.mxu0 0.0
  %456 = vmatpush1.msra.mxu0 %v426
  %457 = vmatprep.subr.mxu0 0.0
  %458 = vmatpush1.msra.mxu0 %v427
  %459 = vmatprep.subr.mxu0 0.0
  %460 = vmatpush1.msra.mxu0 %v428
  %461 = vmatprep.subr.mxu0 0.0
  %462 = vmatpush1.msra.mxu0 0.0
  %463 = vmatprep.subr.mxu0 0.0
  %464 = vmatpush1.msra.mxu0 0.0
  %465 = vmatprep.subr.mxu0 0.0
  %466 = vmatpush1.msra.mxu0 0.0
  %467 = vmatprep.subr.mxu0 0.0
  %468 = vmatpush1.msra.mxu0 0.0
  %469 = vmatprep.subr.mxu0 0.0
  %470 = vmatpush1.msra.mxu0 0.0
  %471 = vmatprep.subr.mxu0 0.0
  %472 = vmatpush1.msra.mxu0 0.0
  %473 = vmatprep.subr.mxu0 0.0
  %474 = vmatpush1.msra.mxu0 0.0
  %475 = vmatprep.subr.mxu0 0.0
  %476 = vmatpush1.msra.mxu0 0.0
  %477 = vmatprep.subr.mxu0 0.0
  %478 = vmatpush1.msra.mxu0 0.0
  %479 = vmatprep.subr.mxu0 0.0
  %480 = vmatpush1.msra.mxu0 0.0
  %481 = vmatprep.subr.mxu0 0.0
  %482 = vmatpush1.msra.mxu0 0.0
  %483 = vmatprep.subr.mxu0 0.0
  %484 = vmatpush1.msra.mxu0 0.0
  %485 = vmatprep.subr.mxu0 0.0
  %486 = vmatpush1.msra.mxu0 0.0
  %487 = vmatprep.subr.mxu0 0.0
  %488 = vmatpush1.msra.mxu0 0.0
  %489 = vmatprep.subr.mxu0 0.0
  %490 = vmatpush1.msra.mxu0 0.0
  %491 = vmatprep.subr.mxu0 0.0
  %492 = vmatpush1.msra.mxu0 0.0
  %493 = vmatprep.mubr.f32.mxu0 0.0
  %494 = vmatmul.mubr.f32.gmra.mrb[0].mxu0 %v412
  %v495 = vpop.f32.mrb[0].mxu0
  %v496 = vadd.f32 0.0, %v495
  %v497 = vpop.f32.mrb[0].mxu0
  %498 = vdwg.mxu0
  %v499 = vadd.f32 %v411, %v496
  %v500 = vtanh.pop %v499
  %s501 = scalar_lea.vmem [#allocation2], 32
  %502 = vst [vmem:[%s501] sm:$0xff] %v500
  %503 = vst [vmem:[#allocation3] sm:$0xff] %v500
  %s504 = scalar_lea.vmem %s0, 40
  %v505 = vld [vmem:[%s504] sm:$0xff]
  %v506 = vld [vmem:[#allocation3] sm:$0xff]
  %v507 = vld [vmem:[%s2] sm:$0xff]
  %v508 = vld [vmem:[%s2 + $0x8] sm:$0xff]
  %v509 = vld [vmem:[%s2 + $0x10] sm:$0xff]
  %v510 = vld [vmem:[%s2 + $0x18] sm:$0xff]
  %v511 = vld [vmem:[%s2 + $0x20] sm:$0xff]
  %v512 = vld [vmem:[%s2 + $0x28] sm:$0xff]
  %v513 = vld [vmem:[%s2 + $0x30] sm:$0xff]
  %v514 = vld [vmem:[%s2 + $0x38] sm:$0xff]
  %v515 = vld [vmem:[%s2 + $0x40] sm:$0xff]
  %v516 = vld [vmem:[%s2 + $0x48] sm:$0xff]
  %v517 = vld [vmem:[%s2 + $0x50] sm:$0xff]
  %v518 = vld [vmem:[%s2 + $0x58] sm:$0xff]
  %v519 = vld [vmem:[%s2 + $0x60] sm:$0xff]
  %v520 = vld [vmem:[%s2 + $0x68] sm:$0xff]
  %v521 = vld [vmem:[%s2 + $0x70] sm:$0xff]
  %v522 = vld [vmem:[%s2 + $0x78] sm:$0xff]
  %523 = vmatprep.subr.mxu0 0.0
  %524 = vmatpush1.msra.mxu0 %v507
  %525 = vmatprep.subr.mxu0 0.0
  %526 = vmatpush1.msra.mxu0 %v508
  %527 = vmatprep.subr.mxu0 0.0
  %528 = vmatpush1.msra.mxu0 %v509
  %529 = vmatprep.subr.mxu0 0.0
  %530 = vmatpush1.msra.mxu0 %v510
  %531 = vmatprep.subr.mxu0 0.0
  %532 = vmatpush1.msra.mxu0 %v511
  %533 = vmatprep.subr.mxu0 0.0
  %534 = vmatpush1.msra.mxu0 %v512
  %535 = vmatprep.subr.mxu0 0.0
  %536 = vmatpush1.msra.mxu0 %v513
  %537 = vmatprep.subr.mxu0 0.0
  %538 = vmatpush1.msra.mxu0 %v514
  %539 = vmatprep.subr.mxu0 0.0
  %540 = vmatpush1.msra.mxu0 %v515
  %541 = vmatprep.subr.mxu0 0.0
  %542 = vmatpush1.msra.mxu0 %v516
  %543 = vmatprep.subr.mxu0 0.0
  %544 = vmatpush1.msra.mxu0 %v517
  %545 = vmatprep.subr.mxu0 0.0
  %546 = vmatpush1.msra.mxu0 %v518
  %547 = vmatprep.subr.mxu0 0.0
  %548 = vmatpush1.msra.mxu0 %v519
  %549 = vmatprep.subr.mxu0 0.0
  %550 = vmatpush1.msra.mxu0 %v520
  %551 = vmatprep.subr.mxu0 0.0
  %552 = vmatpush1.msra.mxu0 %v521
  %553 = vmatprep.subr.mxu0 0.0
  %554 = vmatpush1.msra.mxu0 %v522
  %555 = vmatprep.subr.mxu0 0.0
  %556 = vmatpush1.msra.mxu0 0.0
  %557 = vmatprep.subr.mxu0 0.0
  %558 = vmatpush1.msra.mxu0 0.0
  %559 = vmatprep.subr.mxu0 0.0
  %560 = vmatpush1.msra.mxu0 0.0
  %561 = vmatprep.subr.mxu0 0.0
  %562 = vmatpush1.msra.mxu0 0.0
  %563 = vmatprep.subr.mxu0 0.0
  %564 = vmatpush1.msra.mxu0 0.0
  %565 = vmatprep.subr.mxu0 0.0
  %566 = vmatpush1.msra.mxu0 0.0
  %567 = vmatprep.subr.mxu0 0.0
  %568 = vmatpush1.msra.mxu0 0.0
  %569 = vmatprep.subr.mxu0 0.0
  %570 = vmatpush1.msra.mxu0 0.0
  %571 = vmatprep.subr.mxu0 0.0
  %572 = vmatpush1.msra.mxu0 0.0
  %573 = vmatprep.subr.mxu0 0.0
  %574 = vmatpush1.msra.mxu0 0.0
  %575 = vmatprep.subr.mxu0 0.0
  %576 = vmatpush1.msra.mxu0 0.0
  %577 = vmatprep.subr.mxu0 0.0
  %578 = vmatpush1.msra.mxu0 0.0
  %579 = vmatprep.subr.mxu0 0.0
  %580 = vmatpush1.msra.mxu0 0.0
  %581 = vmatprep.subr.mxu0 0.0
  %582 = vmatpush1.msra.mxu0 0.0
  %583 = vmatprep.subr.mxu0 0.0
  %584 = vmatpush1.msra.mxu0 0.0
  %585 = vmatprep.subr.mxu0 0.0
  %586 = vmatpush1.msra.mxu0 0.0
  %587 = vmatprep.mubr.f32.mxu0 0.0
  %588 = vmatmul.mubr.f32.gmra.mrb[0].mxu0 %v506
  %v589 = vpop.f32.mrb[0].mxu0
  %v590 = vadd.f32 0.0, %v589
  %v591 = vpop.f32.mrb[0].mxu0
  %592 = vdwg.mxu0
  %v593 = vadd.f32 %v505, %v590
  %v594 = vtanh.pop %v593
  %s595 = scalar_lea.vmem [#allocation2], 40
  %596 = vst [vmem:[%s595] sm:$0xff] %v594
  %597 = vst [vmem:[#allocation3] sm:$0xff] %v594
  %s598 = scalar_lea.vmem %s0, 48
  %v599 = vld [vmem:[%s598] sm:$0xff]
  %v600 = vld [vmem:[#allocation3] sm:$0xff]
  %v601 = vld [vmem:[%s2] sm:$0xff]
  %v602 = vld [vmem:[%s2 + $0x8] sm:$0xff]
  %v603 = vld [vmem:[%s2 + $0x10] sm:$0xff]
  %v604 = vld [vmem:[%s2 + $0x18] sm:$0xff]
  %v605 = vld [vmem:[%s2 + $0x20] sm:$0xff]
  %v606 = vld [vmem:[%s2 + $0x28] sm:$0xff]
  %v607 = vld [vmem:[%s2 + $0x30] sm:$0xff]
  %v608 = vld [vmem:[%s2 + $0x38] sm:$0xff]
  %v609 = vld [vmem:[%s2 + $0x40] sm:$0xff]
  %v610 = vld [vmem:[%s2 + $0x48] sm:$0xff]
  %v611 = vld [vmem:[%s2 + $0x50] sm:$0xff]
  %v612 = vld [vmem:[%s2 + $0x58] sm:$0xff]
  %v613 = vld [vmem:[%s2 + $0x60] sm:$0xff]
  %v614 = vld [vmem:[%s2 + $0x68] sm:$0xff]
  %v615 = vld [vmem:[%s2 + $0x70] sm:$0xff]
  %v616 = vld [vmem:[%s2 + $0x78] sm:$0xff]
  %617 = vmatprep.subr.mxu0 0.0
  %618 = vmatpush1.msra.mxu0 %v601
  %619 = vmatprep.subr.mxu0 0.0
  %620 = vmatpush1.msra.mxu0 %v602
  %621 = vmatprep.subr.mxu0 0.0
  %622 = vmatpush1.msra.mxu0 %v603
  %623 = vmatprep.subr.mxu0 0.0
  %624 = vmatpush1.msra.mxu0 %v604
  %625 = vmatprep.subr.mxu0 0.0
  %626 = vmatpush1.msra.mxu0 %v605
  %627 = vmatprep.subr.mxu0 0.0
  %628 = vmatpush1.msra.mxu0 %v606
  %629 = vmatprep.subr.mxu0 0.0
  %630 = vmatpush1.msra.mxu0 %v607
  %631 = vmatprep.subr.mxu0 0.0
  %632 = vmatpush1.msra.mxu0 %v608
  %633 = vmatprep.subr.mxu0 0.0
  %634 = vmatpush1.msra.mxu0 %v609
  %635 = vmatprep.subr.mxu0 0.0
  %636 = vmatpush1.msra.mxu0 %v610
  %637 = vmatprep.subr.mxu0 0.0
  %638 = vmatpush1.msra.mxu0 %v611
  %639 = vmatprep.subr.mxu0 0.0
  %640 = vmatpush1.msra.mxu0 %v612
  %641 = vmatprep.subr.mxu0 0.0
  %642 = vmatpush1.msra.mxu0 %v613
  %643 = vmatprep.subr.mxu0 0.0
  %644 = vmatpush1.msra.mxu0 %v614
  %645 = vmatprep.subr.mxu0 0.0
  %646 = vmatpush1.msra.mxu0 %v615
  %647 = vmatprep.subr.mxu0 0.0
  %648 = vmatpush1.msra.mxu0 %v616
  %649 = vmatprep.subr.mxu0 0.0
  %650 = vmatpush1.msra.mxu0 0.0
  %651 = vmatprep.subr.mxu0 0.0
  %652 = vmatpush1.msra.mxu0 0.0
  %653 = vmatprep.subr.mxu0 0.0
  %654 = vmatpush1.msra.mxu0 0.0
  %655 = vmatprep.subr.mxu0 0.0
  %656 = vmatpush1.msra.mxu0 0.0
  %657 = vmatprep.subr.mxu0 0.0
  %658 = vmatpush1.msra.mxu0 0.0
  %659 = vmatprep.subr.mxu0 0.0
  %660 = vmatpush1.msra.mxu0 0.0
  %661 = vmatprep.subr.mxu0 0.0
  %662 = vmatpush1.msra.mxu0 0.0
  %663 = vmatprep.subr.mxu0 0.0
  %664 = vmatpush1.msra.mxu0 0.0
  %665 = vmatprep.subr.mxu0 0.0
  %666 = vmatpush1.msra.mxu0 0.0
  %667 = vmatprep.subr.mxu0 0.0
  %668 = vmatpush1.msra.mxu0 0.0
  %669 = vmatprep.subr.mxu0 0.0
  %670 = vmatpush1.msra.mxu0 0.0
  %671 = vmatprep.subr.mxu0 0.0
  %672 = vmatpush1.msra.mxu0 0.0
  %673 = vmatprep.subr.mxu0 0.0
  %674 = vmatpush1.msra.mxu0 0.0
  %675 = vmatprep.subr.mxu0 0.0
  %676 = vmatpush1.msra.mxu0 0.0
  %677 = vmatprep.subr.mxu0 0.0
  %678 = vmatpush1.msra.mxu0 0.0
  %679 = vmatprep.subr.mxu0 0.0
  %680 = vmatpush1.msra.mxu0 0.0
  %681 = vmatprep.mubr.f32.mxu0 0.0
  %682 = vmatmul.mubr.f32.gmra.mrb[0].mxu0 %v600
  %v683 = vpop.f32.mrb[0].mxu0
  %v684 = vadd.f32 0.0, %v683
  %v685 = vpop.f32.mrb[0].mxu0
  %686 = vdwg.mxu0
  %v687 = vadd.f32 %v599, %v684
  %v688 = vtanh.pop %v687
  %s689 = scalar_lea.vmem [#allocation2], 48
  %690 = vst [vmem:[%s689] sm:$0xff] %v688
  %691 = vst [vmem:[#allocation3] sm:$0xff] %v688
  %s692 = scalar_lea.vmem %s0, 56
  %v693 = vld [vmem:[%s692] sm:$0xff]
  %v694 = vld [vmem:[#allocation3] sm:$0xff]
  %v695 = vld [vmem:[%s2] sm:$0xff]
  %v696 = vld [vmem:[%s2 + $0x8] sm:$0xff]
  %v697 = vld [vmem:[%s2 + $0x10] sm:$0xff]
  %v698 = vld [vmem:[%s2 + $0x18] sm:$0xff]
  %v699 = vld [vmem:[%s2 + $0x20] sm:$0xff]
  %v700 = vld [vmem:[%s2 + $0x28] sm:$0xff]
  %v701 = vld [vmem:[%s2 + $0x30] sm:$0xff]
  %v702 = vld [vmem:[%s2 + $0x38] sm:$0xff]
  %v703 = vld [vmem:[%s2 + $0x40] sm:$0xff]
  %v704 = vld [vmem:[%s2 + $0x48] sm:$0xff]
  %v705 = vld [vmem:[%s2 + $0x50] sm:$0xff]
  %v706 = vld [vmem:[%s2 + $0x58] sm:$0xff]
  %v707 = vld [vmem:[%s2 + $0x60] sm:$0xff]
  %v708 = vld [vmem:[%s2 + $0x68] sm:$0xff]
  %v709 = vld [vmem:[%s2 + $0x70] sm:$0xff]
  %v710 = vld [vmem:[%s2 + $0x78] sm:$0xff]
  %711 = vmatprep.subr.mxu0 0.0
  %712 = vmatpush1.msra.mxu0 %v695
  %713 = vmatprep.subr.mxu0 0.0
  %714 = vmatpush1.msra.mxu0 %v696
  %715 = vmatprep.subr.mxu0 0.0
  %716 = vmatpush1.msra.mxu0 %v697
  %717 = vmatprep.subr.mxu0 0.0
  %718 = vmatpush1.msra.mxu0 %v698
  %719 = vmatprep.subr.mxu0 0.0
  %720 = vmatpush1.msra.mxu0 %v699
  %721 = vmatprep.subr.mxu0 0.0
  %722 = vmatpush1.msra.mxu0 %v700
  %723 = vmatprep.subr.mxu0 0.0
  %724 = vmatpush1.msra.mxu0 %v701
  %725 = vmatprep.subr.mxu0 0.0
  %726 = vmatpush1.msra.mxu0 %v702
  %727 = vmatprep.subr.mxu0 0.0
  %728 = vmatpush1.msra.mxu0 %v703
  %729 = vmatprep.subr.mxu0 0.0
  %730 = vmatpush1.msra.mxu0 %v704
  %731 = vmatprep.subr.mxu0 0.0
  %732 = vmatpush1.msra.mxu0 %v705
  %733 = vmatprep.subr.mxu0 0.0
  %734 = vmatpush1.msra.mxu0 %v706
  %735 = vmatprep.subr.mxu0 0.0
  %736 = vmatpush1.msra.mxu0 %v707
  %737 = vmatprep.subr.mxu0 0.0
  %738 = vmatpush1.msra.mxu0 %v708
  %739 = vmatprep.subr.mxu0 0.0
  %740 = vmatpush1.msra.mxu0 %v709
  %741 = vmatprep.subr.mxu0 0.0
  %742 = vmatpush1.msra.mxu0 %v710
  %743 = vmatprep.subr.mxu0 0.0
  %744 = vmatpush1.msra.mxu0 0.0
  %745 = vmatprep.subr.mxu0 0.0
  %746 = vmatpush1.msra.mxu0 0.0
  %747 = vmatprep.subr.mxu0 0.0
  %748 = vmatpush1.msra.mxu0 0.0
  %749 = vmatprep.subr.mxu0 0.0
  %750 = vmatpush1.msra.mxu0 0.0
  %751 = vmatprep.subr.mxu0 0.0
  %752 = vmatpush1.msra.mxu0 0.0
  %753 = vmatprep.subr.mxu0 0.0
  %754 = vmatpush1.msra.mxu0 0.0
  %755 = vmatprep.subr.mxu0 0.0
  %756 = vmatpush1.msra.mxu0 0.0
  %757 = vmatprep.subr.mxu0 0.0
  %758 = vmatpush1.msra.mxu0 0.0
  %759 = vmatprep.subr.mxu0 0.0
  %760 = vmatpush1.msra.mxu0 0.0
  %761 = vmatprep.subr.mxu0 0.0
  %762 = vmatpush1.msra.mxu0 0.0
  %763 = vmatprep.subr.mxu0 0.0
  %764 = vmatpush1.msra.mxu0 0.0
  %765 = vmatprep.subr.mxu0 0.0
  %766 = vmatpush1.msra.mxu0 0.0
  %767 = vmatprep.subr.mxu0 0.0
  %768 = vmatpush1.msra.mxu0 0.0
  %769 = vmatprep.subr.mxu0 0.0
  %770 = vmatpush1.msra.mxu0 0.0
  %771 = vmatprep.subr.mxu0 0.0
  %772 = vmatpush1.msra.mxu0 0.0
  %773 = vmatprep.subr.mxu0 0.0
  %774 = vmatpush1.msra.mxu0 0.0
  %775 = vmatprep.mubr.f32.mxu0 0.0
  %776 = vmatmul.mubr.f32.gmra.mrb[0].mxu0 %v694
  %v777 = vpop.f32.mrb[0].mxu0
  %v778 = vadd.f32 0.0, %v777
  %v779 = vpop.f32.mrb[0].mxu0
  %780 = vdwg.mxu0
  %v781 = vadd.f32 %v693, %v778
  %v782 = vtanh.pop %v781
  %s783 = scalar_lea.vmem [#allocation2], 56
  %784 = vst [vmem:[%s783] sm:$0xff] %v782
  %785 = vst [vmem:[#allocation3] sm:$0xff] %v782
  %v786 = vld [vmem:[#allocation2] sm:$0xff]
  %v787 = vld [vmem:[#allocation2 + $0x8] sm:$0xff]
  %v788 = vld [vmem:[#allocation2 + $0x10] sm:$0xff]
  %v789 = vld [vmem:[#allocation2 + $0x18] sm:$0xff]
  %v790 = vld [vmem:[#allocation2 + $0x20] sm:$0xff]
  %v791 = vld [vmem:[#allocation2 + $0x28] sm:$0xff]
  %v792 = vld [vmem:[#allocation2 + $0x30] sm:$0xff]
  %v793 = vld [vmem:[#allocation2 + $0x38] sm:$0xff]
  %v794 = vld [vmem:[%s3] sm:$0xff]
  %v795 = vld [vmem:[%s3 + $0x8] sm:$0xff]
  %v796 = vld [vmem:[%s3 + $0x10] sm:$0xff]
  %v797 = vld [vmem:[%s3 + $0x18] sm:$0xff]
  %v798 = vld [vmem:[%s3 + $0x20] sm:$0xff]
  %v799 = vld [vmem:[%s3 + $0x28] sm:$0xff]
  %v800 = vld [vmem:[%s3 + $0x30] sm:$0xff]
  %v801 = vld [vmem:[%s3 + $0x38] sm:$0xff]
  %v802 = vld [vmem:[%s3 + $0x40] sm:$0xff]
  %v803 = vld [vmem:[%s3 + $0x48] sm:$0xff]
  %v804 = vld [vmem:[%s3 + $0x50] sm:$0xff]
  %v805 = vld [vmem:[%s3 + $0x58] sm:$0xff]
  %v806 = vld [vmem:[%s3 + $0x60] sm:$0xff]
  %v807 = vld [vmem:[%s3 + $0x68] sm:$0xff]
  %v808 = vld [vmem:[%s3 + $0x70] sm:$0xff]
  %v809 = vld [vmem:[%s3 + $0x78] sm:$0xff]
  %v810 = vld [vmem:[%s4] sm:$0x1]
  %v812 = vlaneseq
  %v813 = vshrl.u32 %v812, 7
  %v814 = vsub.s32 0, %v813
  %v815 = vrot.slane %v810, %v814
  %817 = vmatprep.subr.mxu0 0.0
  %818 = vmatpush1.msra.mxu0 %v794
  %819 = vmatprep.subr.mxu0 0.0
  %820 = vmatpush1.msra.mxu0 %v795
  %821 = vmatprep.subr.mxu0 0.0
  %822 = vmatpush1.msra.mxu0 %v796
  %823 = vmatprep.subr.mxu0 0.0
  %824 = vmatpush1.msra.mxu0 %v797
  %825 = vmatprep.subr.mxu0 0.0
  %826 = vmatpush1.msra.mxu0 %v798
  %827 = vmatprep.subr.mxu0 0.0
  %828 = vmatpush1.msra.mxu0 %v799
  %829 = vmatprep.subr.mxu0 0.0
  %830 = vmatpush1.msra.mxu0 %v800
  %831 = vmatprep.subr.mxu0 0.0
  %832 = vmatpush1.msra.mxu0 %v801
  %833 = vmatprep.subr.mxu0 0.0
  %834 = vmatpush1.msra.mxu0 %v802
  %835 = vmatprep.subr.mxu0 0.0
  %836 = vmatpush1.msra.mxu0 %v803
  %837 = vmatprep.subr.mxu0 0.0
  %838 = vmatpush1.msra.mxu0 %v804
  %839 = vmatprep.subr.mxu0 0.0
  %840 = vmatpush1.msra.mxu0 %v805
  %841 = vmatprep.subr.mxu0 0.0
  %842 = vmatpush1.msra.mxu0 %v806
  %843 = vmatprep.subr.mxu0 0.0
  %844 = vmatpush1.msra.mxu0 %v807
  %845 = vmatprep.subr.mxu0 0.0
  %846 = vmatpush1.msra.mxu0 %v808
  %847 = vmatprep.subr.mxu0 0.0
  %848 = vmatpush1.msra.mxu0 %v809
  %849 = vmatprep.subr.mxu0 0.0
  %850 = vmatpush1.msra.mxu0 0.0
  %851 = vmatprep.subr.mxu0 0.0
  %852 = vmatpush1.msra.mxu0 0.0
  %853 = vmatprep.subr.mxu0 0.0
  %854 = vmatpush1.msra.mxu0 0.0
  %855 = vmatprep.subr.mxu0 0.0
  %856 = vmatpush1.msra.mxu0 0.0
  %857 = vmatprep.subr.mxu0 0.0
  %858 = vmatpush1.msra.mxu0 0.0
  %859 = vmatprep.subr.mxu0 0.0
  %860 = vmatpush1.msra.mxu0 0.0
  %861 = vmatprep.subr.mxu0 0.0
  %862 = vmatpush1.msra.mxu0 0.0
  %863 = vmatprep.subr.mxu0 0.0
  %864 = vmatpush1.msra.mxu0 0.0
  %865 = vmatprep.subr.mxu0 0.0
  %866 = vmatpush1.msra.mxu0 0.0
  %867 = vmatprep.subr.mxu0 0.0
  %868 = vmatpush1.msra.mxu0 0.0
  %869 = vmatprep.subr.mxu0 0.0
  %870 = vmatpush1.msra.mxu0 0.0
  %871 = vmatprep.subr.mxu0 0.0
  %872 = vmatpush1.msra.mxu0 0.0
  %873 = vmatprep.subr.mxu0 0.0
  %874 = vmatpush1.msra.mxu0 0.0
  %875 = vmatprep.subr.mxu0 0.0
  %876 = vmatpush1.msra.mxu0 0.0
  %877 = vmatprep.subr.mxu0 0.0
  %878 = vmatpush1.msra.mxu0 0.0
  %879 = vmatprep.subr.mxu0 0.0
  %880 = vmatpush1.msra.mxu0 0.0
  %881 = vmatprep.mubr.f32.mxu0 0.0
  %882 = vmatmul.mubr.f32.gmra.mrb[0].mxu0 %v786
  %v883 = vpop.f32.mrb[0].mxu0
  %v884 = vadd.f32 %v815, %v883
  %v885 = vpop.f32.mrb[0].mxu0
  %886 = vmatprep.mubr.f32.mxu0 0.0
  %887 = vmatmul.mubr.f32.gmra.mrb[0].mxu0 %v787
  %v888 = vpop.f32.mrb[0].mxu0
  %v889 = vadd.f32 %v815, %v888
  %v890 = vpop.f32.mrb[0].mxu0
  %891 = vmatprep.mubr.f32.mxu0 0.0
  %892 = vmatmul.mubr.f32.gmra.mrb[0].mxu0 %v788
  %v893 = vpop.f32.mrb[0].mxu0
  %v894 = vadd.f32 %v815, %v893
  %v895 = vpop.f32.mrb[0].mxu0
  %896 = vmatprep.mubr.f32.mxu0 0.0
  %897 = vmatmul.mubr.f32.gmra.mrb[0].mxu0 %v789
  %v898 = vpop.f32.mrb[0].mxu0
  %v899 = vadd.f32 %v815, %v898
  %v900 = vpop.f32.mrb[0].mxu0
  %901 = vmatprep.mubr.f32.mxu0 0.0
  %902 = vmatmul.mubr.f32.gmra.mrb[0].mxu0 %v790
  %v903 = vpop.f32.mrb[0].mxu0
  %v904 = vadd.f32 %v815, %v903
  %v905 = vpop.f32.mrb[0].mxu0
  %906 = vmatprep.mubr.f32.mxu0 0.0
  %907 = vmatmul.mubr.f32.gmra.mrb[0].mxu0 %v791
  %v908 = vpop.f32.mrb[0].mxu0
  %v909 = vadd.f32 %v815, %v908
  %v910 = vpop.f32.mrb[0].mxu0
  %911 = vmatprep.mubr.f32.mxu0 0.0
  %912 = vmatmul.mubr.f32.gmra.mrb[0].mxu0 %v792
  %v913 = vpop.f32.mrb[0].mxu0
  %v914 = vadd.f32 %v815, %v913
  %v915 = vpop.f32.mrb[0].mxu0
  %916 = vmatprep.mubr.f32.mxu0 0.0
  %917 = vmatmul.mubr.f32.gmra.mrb[0].mxu0 %v793
  %v918 = vpop.f32.mrb[0].mxu0
  %v919 = vadd.f32 %v815, %v918
  %v920 = vpop.f32.mrb[0].mxu0
  %921 = vdwg.mxu0
  %922 = vst [vmem:[%s5] sm:$0xff] %v884
  %923 = vst [vmem:[%s5 + $0x8] sm:$0xff] %v889
  %924 = vst [vmem:[%s5 + $0x10] sm:$0xff] %v894
  %925 = vst [vmem:[%s5 + $0x18] sm:$0xff] %v899
  %926 = vst [vmem:[%s5 + $0x20] sm:$0xff] %v904
  %927 = vst [vmem:[%s5 + $0x28] sm:$0xff] %v909
  %928 = vst [vmem:[%s5 + $0x30] sm:$0xff] %v914
  %929 = vst [vmem:[%s5 + $0x38] sm:$0xff] %v919
  %v930 = vld [vmem:[#allocation3] sm:$0xff]
  %931 = vst [vmem:[%s6] sm:$0xff] %v930
  // Predicated region
  $region26: #{rnn_forward.3} parent=0 // pred_check
    _
  $region27: #{rnn_forward.3} parent=0 // pred_check_branch
    %933 = sbr.rel (0) target = $region29
  $region28: #{rnn_forward.3} parent=0 // pred_region
    _
  $region29: #{rnn_forward.3} parent=0 // pred_fallthru
    _
  // Predicated region
  $region30: #{rnn_forward.3} parent=0 // pred_check
    _
  $region31: #{rnn_forward.3} parent=0 // pred_check_branch
    %935 = sbr.rel (0) target = $region33
  $region32: #{rnn_forward.3} parent=0 // pred_region
    _
  $region33: #{rnn_forward.3} parent=0 // pred_fallthru
    _
  // Predicated region
  $region34: #{rnn_forward.3} parent=0 // pred_check
    _
  $region35: #{rnn_forward.3} parent=0 // pred_check_branch
    %937 = sbr.rel (0) target = $region37
  $region36: #{rnn_forward.3} parent=0 // pred_region
    _
  $region37: #{rnn_forward.3} parent=0 // pred_fallthru
    _
  // Predicated region
  $region38: #{rnn_forward.3} parent=0 // pred_check
    _
  $region39: #{rnn_forward.3} parent=0 // pred_check_branch
    %939 = sbr.rel (0) target = $region41
  $region40: #{rnn_forward.3} parent=0 // pred_region
    _
  $region41: #{rnn_forward.3} parent=0 // pred_fallthru
    _

</llo_original>
